<compile_context>
chip_gen: v5e
topology: v5e:2x2
jax: 0.10.0
libtpu: 0.0.40
codegen_flags: <defaults>
</compile_context>

<pallas_src>
import math

import jax
import jax.numpy as jnp
from jax.experimental import pallas as pl
from jax.experimental.pallas import tpu as pltpu


def _round_up(x, m):
    return ((x + m - 1) // m) * m


def _vmem_capacity_bytes():
    try:
        return int(pltpu.get_tpu_info().vmem_capacity_bytes)
    except Exception:
        return 64 * 1024 * 1024   # conservative default (v7x per-core VMEM)


def _choose_tile(M, Cin, Coutp, num_taps, in_itemsize):
    """Pick the largest M tile that fits a per-generation VMEM budget.

    Review: tm=512-1024 (128/256-granular) amortizes the ~0.35us per-grid-step
    overhead; v7x's 64 MiB VMEM caps tm lower than the 128 MiB parts.
    """
    cap = _vmem_capacity_bytes()
    budget = int(cap * 0.80)
    max_tm = 512 if cap <= 64 * 1024 * 1024 else 1024
    # Weight block: constant index_map -> fetched once, but the default pipeline
    # still allocates two buffers for it, so budget 2x.  (Single-buffering it via
    # pipeline_mode=pl.Buffered(1) would halve this footprint.)
    w_bytes = 2 * num_taps * Cin * Coutp * in_itemsize
    tm = 8
    for cand in (1024, 768, 512, 384, 256, 128, 64, 32, 16, 8):
        if cand > max_tm:
            continue
        need = (w_bytes
                + num_taps * 2 * cand * Cin * in_itemsize   # double-buffered tap tiles
                + 2 * cand * Coutp * 4)                     # double-buffered f32 output
        if need <= budget:
            tm = cand
            break
    # TODO(synk): if the weight block alone exceeds the budget (very large
    # Cin*Cout), also tile the Cout/Cin axes; not needed at this module's sizes.
    tm = min(tm, _round_up(M, 8))
    est = w_bytes + num_taps * 2 * tm * Cin * in_itemsize + 2 * tm * Coutp * 4
    vmem_limit = int(min(cap, max(32 * 1024 * 1024, int(est * 1.25))))
    return tm, vmem_limit


def _make_conv_kernel(num_taps):
    def kernel(*refs):
        # refs = (tap_0 .. tap_{T-1}, weight(T, Cin, Coutp), out(tm, Coutp))
        w_ref = refs[num_taps]
        o_ref = refs[num_taps + 1]
        # Tap reduction fused into the kernel: accumulate directly into the
        # VMEM-resident output block in f32 (single store path, lane-dense).
        o_ref[...] = jnp.dot(refs[0][...], w_ref[0],
                             preferred_element_type=jnp.float32)
        for t in range(1, num_taps):
            o_ref[...] += jnp.dot(refs[t][...], w_ref[t],
                                  preferred_element_type=jnp.float32)
    return kernel


def prepare_weight(weight_oihw, use_bf16=False):
    """(Cout, Cin, KH, KW) -> (KH*KW, Cin, Coutp), Coutp padded to 128 lanes.

    Fold this into the params once (perf review) instead of per forward call.
    """
    Cout, Cin, KH, KW = weight_oihw.shape
    Coutp = _round_up(Cout, 128)
    w = jnp.transpose(weight_oihw, (2, 3, 1, 0)).reshape(KH * KW, Cin, Cout)
    if Coutp != Cout:
        w = jnp.pad(w, ((0, 0), (0, 0), (0, Coutp - Cout)))
    if use_bf16:
        w = w.astype(jnp.bfloat16)
    return w, (KH, KW, Cout)


def down_conv_nhwc(x_nhwc, w_taps, meta, *, stride=2, padding=1, use_bf16=False):
    """Channels-last fast path (no NCHW<->NHWC transposes around the kernel)."""
    KH, KW, Cout = meta
    N, H, W, Cin = x_nhwc.shape
    num_taps, Cin2, Coutp = w_taps.shape
    assert Cin == Cin2 and num_taps == KH * KW

    Hout = (H + 2 * padding - KH) // stride + 1
    Wout = (W + 2 * padding - KW) // stride + 1
    M = N * Hout * Wout

    view_dtype = jnp.bfloat16 if use_bf16 else x_nhwc.dtype
    xp = jnp.pad(x_nhwc, ((0, 0), (padding, padding), (padding, padding), (0, 0)))
    # KH*KW un-concatenated strided views (no 2.25x im2col concat+re-read).
    views = []
    for kh in range(KH):
        for kw in range(KW):
            v = xp[:, kh:kh + stride * Hout:stride,
                      kw:kw + stride * Wout:stride, :]
            views.append(v.reshape(M, Cin).astype(view_dtype))

    in_itemsize = jnp.dtype(view_dtype).itemsize
    tm, vmem_limit = _choose_tile(M, Cin, Coutp, num_taps, in_itemsize)

    out = pl.pallas_call(
        _make_conv_kernel(num_taps),
        out_shape=jax.ShapeDtypeStruct((M, Coutp), jnp.float32),
        grid_spec=pltpu.PrefetchScalarGridSpec(
            num_scalar_prefetch=0,
            grid=(pl.cdiv(M, tm),),          # ragged last tile handled by masking
            in_specs=(
                [pl.BlockSpec((tm, Cin), lambda i: (i, 0))
                 for _ in range(num_taps)]
                + [pl.BlockSpec((num_taps, Cin, Coutp), lambda i: (0, 0, 0))]
            ),
            out_specs=pl.BlockSpec((tm, Coutp), lambda i: (i, 0)),
        ),
        compiler_params=pltpu.CompilerParams(
            dimension_semantics=("parallel",),   # shards M across v7x's 2 TCs
            vmem_limit_bytes=vmem_limit,
        ),
    )(*views, w_taps)

    return out[:, :Cout].reshape(N, Hout, Wout, Cout)


def down_forward(x_nchw, weight_oihw, *, stride=2, padding=1, use_bf16=False):
    """PyTorch-parity (NCHW in / NCHW out) forward of `down` with mode='conv'.

    NOTE (perf): the two transposes here are layout plumbing only; prefer
    down_conv_nhwc + prepare_weight (hoisted once) when the surrounding model
    is channels-last.
    """
    # TODO(synk): mode='pool' (nn.MaxPool2d(2)) branch not implemented; the
    # module's default mode='conv' is what is implemented here.
    w_taps, meta = prepare_weight(weight_oihw, use_bf16=use_bf16)
    x = jnp.transpose(x_nchw, (0, 2, 3, 1))                  # NCHW -> NHWC
    y = down_conv_nhwc(x, w_taps, meta, stride=stride, padding=padding,
                       use_bf16=use_bf16)
    return jnp.transpose(y, (0, 3, 1, 2))                    # NHWC -> NCHW


if __name__ == "__main__":
    key = jax.random.PRNGKey(0)
    kx, kw = jax.random.split(key)

    # Small shapes consistent with the module.
    N, Cin, H, W = 2, 4, 16, 16
    Cout, KH, KW = 8, 3, 3

    x = jax.random.normal(kx, (N, Cin, H, W), dtype=jnp.float32)

    # Deterministic init mimicking PyTorch's default Conv2d kaiming-uniform bound.
    fan_in = Cin * KH * KW
    bound = 1.0 / math.sqrt(fan_in)
    weight = jax.random.uniform(kw, (Cout, Cin, KH, KW), jnp.float32,
                                minval=-bound, maxval=bound)

    fwd = jax.jit(down_forward)
    out = jax.block_until_ready(fwd(x, weight))

    # Cross-check against XLA's conv (same semantics as nn.Conv2d stride=2, pad=1).
    ref = jax.lax.conv_general_dilated(
        x, weight, window_strides=(2, 2), padding=((1, 1), (1, 1)),
        dimension_numbers=("NCHW", "OIHW", "NCHW"))
    assert out.shape == ref.shape == (N, Cout, H // 2, W // 2)
    assert jnp.allclose(out, ref, atol=1e-4, rtol=1e-4)

    print("KERNEL_OK")
</pallas_src>

<mosaic_0001>
module attributes {stable_mosaic.version = 11 : i64} {
  func.func @kernel(%arg0: i32, %arg1: memref<128x4xf32, #tpu.memory_space<vmem>>, %arg2: memref<128x4xf32, #tpu.memory_space<vmem>>, %arg3: memref<128x4xf32, #tpu.memory_space<vmem>>, %arg4: memref<128x4xf32, #tpu.memory_space<vmem>>, %arg5: memref<128x4xf32, #tpu.memory_space<vmem>>, %arg6: memref<128x4xf32, #tpu.memory_space<vmem>>, %arg7: memref<128x4xf32, #tpu.memory_space<vmem>>, %arg8: memref<128x4xf32, #tpu.memory_space<vmem>>, %arg9: memref<128x4xf32, #tpu.memory_space<vmem>>, %arg10: memref<9x4x128xf32, #tpu.memory_space<vmem>>, %arg11: memref<128x128xf32, #tpu.memory_space<vmem>>) attributes {dimension_semantics = [#tpu.dimension_semantics<parallel>], iteration_bounds = array<i64: 1>, scalar_prefetch = 0 : i64, scratch_operands = 0 : i64, tpu.core_type = #tpu.core_type<tc>, window_params = [{transform_indices = @transform_0, window_bounds = array<i64: 128, 4>}, {transform_indices = @transform_1, window_bounds = array<i64: 128, 4>}, {transform_indices = @transform_2, window_bounds = array<i64: 128, 4>}, {transform_indices = @transform_3, window_bounds = array<i64: 128, 4>}, {transform_indices = @transform_4, window_bounds = array<i64: 128, 4>}, {transform_indices = @transform_5, window_bounds = array<i64: 128, 4>}, {transform_indices = @transform_6, window_bounds = array<i64: 128, 4>}, {transform_indices = @transform_7, window_bounds = array<i64: 128, 4>}, {transform_indices = @transform_8, window_bounds = array<i64: 128, 4>}, {pipeline_mode = #tpu.pipeline_mode<synchronous>, transform_indices = @transform_9, window_bounds = array<i64: 9, 4, 128>}, {transform_indices = @transform_10, window_bounds = array<i64: 128, 128>}]} {
    %c0 = arith.constant 0 : index
    %c0_0 = arith.constant 0 : index
    %0 = vector.load %arg1[%c0, %c0_0] : memref<128x4xf32, #tpu.memory_space<vmem>>, vector<128x4xf32>
    %c0_1 = arith.constant 0 : index
    %c0_2 = arith.constant 0 : index
    %c0_3 = arith.constant 0 : index
    %1 = vector.load %arg10[%c0_1, %c0_2, %c0_3] : memref<9x4x128xf32, #tpu.memory_space<vmem>>, vector<1x4x128xf32>
    %2 = vector.shape_cast %1 : vector<1x4x128xf32> to vector<4x128xf32>
    %cst = arith.constant dense<0.000000e+00> : vector<128x128xf32>
    %3 = tpu.matmul %0, %2, %cst {dimension_numbers = #tpu.dot_dimension_numbers<[1], [0], [0], [1], [0, 0, 1, 1], [], []>} : vector<128x4xf32>, vector<4x128xf32>, vector<128x128xf32> -> vector<128x128xf32>
    %c0_4 = arith.constant 0 : index
    %c0_5 = arith.constant 0 : index
    %4 = vector.load %arg11[%c0_4, %c0_5] : memref<128x128xf32, #tpu.memory_space<vmem>>, vector<128x128xf32>
    tpu.vector_store %arg11[%c0_4, %c0_5], %3 {strides = array<i32>} : memref<128x128xf32, #tpu.memory_space<vmem>>, vector<128x128xf32>,
    %c0_6 = arith.constant 0 : index
    %c0_7 = arith.constant 0 : index
    %5 = vector.load %arg11[%c0_6, %c0_7] : memref<128x128xf32, #tpu.memory_space<vmem>>, vector<128x128xf32>
    %c0_8 = arith.constant 0 : index
    %c0_9 = arith.constant 0 : index
    %6 = vector.load %arg2[%c0_8, %c0_9] : memref<128x4xf32, #tpu.memory_space<vmem>>, vector<128x4xf32>
    %c1 = arith.constant 1 : index
    %c0_10 = arith.constant 0 : index
    %c0_11 = arith.constant 0 : index
    %7 = vector.load %arg10[%c1, %c0_10, %c0_11] : memref<9x4x128xf32, #tpu.memory_space<vmem>>, vector<1x4x128xf32>
    %8 = vector.shape_cast %7 : vector<1x4x128xf32> to vector<4x128xf32>
    %cst_12 = arith.constant dense<0.000000e+00> : vector<128x128xf32>
    %9 = tpu.matmul %6, %8, %cst_12 {dimension_numbers = #tpu.dot_dimension_numbers<[1], [0], [0], [1], [0, 0, 1, 1], [], []>} : vector<128x4xf32>, vector<4x128xf32>, vector<128x128xf32> -> vector<128x128xf32>
    %10 = arith.addf %5, %9 : vector<128x128xf32>
    %c0_13 = arith.constant 0 : index
    %c0_14 = arith.constant 0 : index
    %11 = vector.load %arg11[%c0_13, %c0_14] : memref<128x128xf32, #tpu.memory_space<vmem>>, vector<128x128xf32>
    tpu.vector_store %arg11[%c0_13, %c0_14], %10 {strides = array<i32>} : memref<128x128xf32, #tpu.memory_space<vmem>>, vector<128x128xf32>,
    %c0_15 = arith.constant 0 : index
    %c0_16 = arith.constant 0 : index
    %12 = vector.load %arg11[%c0_15, %c0_16] : memref<128x128xf32, #tpu.memory_space<vmem>>, vector<128x128xf32>
    %c0_17 = arith.constant 0 : index
    %c0_18 = arith.constant 0 : index
    %13 = vector.load %arg3[%c0_17, %c0_18] : memref<128x4xf32, #tpu.memory_space<vmem>>, vector<128x4xf32>
    %c2 = arith.constant 2 : index
    %c0_19 = arith.constant 0 : index
    %c0_20 = arith.constant 0 : index
    %14 = vector.load %arg10[%c2, %c0_19, %c0_20] : memref<9x4x128xf32, #tpu.memory_space<vmem>>, vector<1x4x128xf32>
    %15 = vector.shape_cast %14 : vector<1x4x128xf32> to vector<4x128xf32>
    %cst_21 = arith.constant dense<0.000000e+00> : vector<128x128xf32>
    %16 = tpu.matmul %13, %15, %cst_21 {dimension_numbers = #tpu.dot_dimension_numbers<[1], [0], [0], [1], [0, 0, 1, 1], [], []>} : vector<128x4xf32>, vector<4x128xf32>, vector<128x128xf32> -> vector<128x128xf32>
    %17 = arith.addf %12, %16 : vector<128x128xf32>
    %c0_22 = arith.constant 0 : index
    %c0_23 = arith.constant 0 : index
    %18 = vector.load %arg11[%c0_22, %c0_23] : memref<128x128xf32, #tpu.memory_space<vmem>>, vector<128x128xf32>
    tpu.vector_store %arg11[%c0_22, %c0_23], %17 {strides = array<i32>} : memref<128x128xf32, #tpu.memory_space<vmem>>, vector<128x128xf32>,
    %c0_24 = arith.constant 0 : index
    %c0_25 = arith.constant 0 : index
    %19 = vector.load %arg11[%c0_24, %c0_25] : memref<128x128xf32, #tpu.memory_space<vmem>>, vector<128x128xf32>
    %c0_26 = arith.constant 0 : index
    %c0_27 = arith.constant 0 : index
    %20 = vector.load %arg4[%c0_26, %c0_27] : memref<128x4xf32, #tpu.memory_space<vmem>>, vector<128x4xf32>
    %c3 = arith.constant 3 : index
    %c0_28 = arith.constant 0 : index
    %c0_29 = arith.constant 0 : index
    %21 = vector.load %arg10[%c3, %c0_28, %c0_29] : memref<9x4x128xf32, #tpu.memory_space<vmem>>, vector<1x4x128xf32>
    %22 = vector.shape_cast %21 : vector<1x4x128xf32> to vector<4x128xf32>
    %cst_30 = arith.constant dense<0.000000e+00> : vector<128x128xf32>
    %23 = tpu.matmul %20, %22, %cst_30 {dimension_numbers = #tpu.dot_dimension_numbers<[1], [0], [0], [1], [0, 0, 1, 1], [], []>} : vector<128x4xf32>, vector<4x128xf32>, vector<128x128xf32> -> vector<128x128xf32>
    %24 = arith.addf %19, %23 : vector<128x128xf32>
    %c0_31 = arith.constant 0 : index
    %c0_32 = arith.constant 0 : index
    %25 = vector.load %arg11[%c0_31, %c0_32] : memref<128x128xf32, #tpu.memory_space<vmem>>, vector<128x128xf32>
    tpu.vector_store %arg11[%c0_31, %c0_32], %24 {strides = array<i32>} : memref<128x128xf32, #tpu.memory_space<vmem>>, vector<128x128xf32>,
    %c0_33 = arith.constant 0 : index
    %c0_34 = arith.constant 0 : index
    %26 = vector.load %arg11[%c0_33, %c0_34] : memref<128x128xf32, #tpu.memory_space<vmem>>, vector<128x128xf32>
    %c0_35 = arith.constant 0 : index
    %c0_36 = arith.constant 0 : index
    %27 = vector.load %arg5[%c0_35, %c0_36] : memref<128x4xf32, #tpu.memory_space<vmem>>, vector<128x4xf32>
    %c4 = arith.constant 4 : index
    %c0_37 = arith.constant 0 : index
    %c0_38 = arith.constant 0 : index
    %28 = vector.load %arg10[%c4, %c0_37, %c0_38] : memref<9x4x128xf32, #tpu.memory_space<vmem>>, vector<1x4x128xf32>
    %29 = vector.shape_cast %28 : vector<1x4x128xf32> to vector<4x128xf32>
    %cst_39 = arith.constant dense<0.000000e+00> : vector<128x128xf32>
    %30 = tpu.matmul %27, %29, %cst_39 {dimension_numbers = #tpu.dot_dimension_numbers<[1], [0], [0], [1], [0, 0, 1, 1], [], []>} : vector<128x4xf32>, vector<4x128xf32>, vector<128x128xf32> -> vector<128x128xf32>
    %31 = arith.addf %26, %30 : vector<128x128xf32>
    %c0_40 = arith.constant 0 : index
    %c0_41 = arith.constant 0 : index
    %32 = vector.load %arg11[%c0_40, %c0_41] : memref<128x128xf32, #tpu.memory_space<vmem>>, vector<128x128xf32>
    tpu.vector_store %arg11[%c0_40, %c0_41], %31 {strides = array<i32>} : memref<128x128xf32, #tpu.memory_space<vmem>>, vector<128x128xf32>,
    %c0_42 = arith.constant 0 : index
    %c0_43 = arith.constant 0 : index
    %33 = vector.load %arg11[%c0_42, %c0_43] : memref<128x128xf32, #tpu.memory_space<vmem>>, vector<128x128xf32>
    %c0_44 = arith.constant 0 : index
    %c0_45 = arith.constant 0 : index
    %34 = vector.load %arg6[%c0_44, %c0_45] : memref<128x4xf32, #tpu.memory_space<vmem>>, vector<128x4xf32>
    %c5 = arith.constant 5 : index
    %c0_46 = arith.constant 0 : index
    %c0_47 = arith.constant 0 : index
    %35 = vector.load %arg10[%c5, %c0_46, %c0_47] : memref<9x4x128xf32, #tpu.memory_space<vmem>>, vector<1x4x128xf32>
    %36 = vector.shape_cast %35 : vector<1x4x128xf32> to vector<4x128xf32>
    %cst_48 = arith.constant dense<0.000000e+00> : vector<128x128xf32>
    %37 = tpu.matmul %34, %36, %cst_48 {dimension_numbers = #tpu.dot_dimension_numbers<[1], [0], [0], [1], [0, 0, 1, 1], [], []>} : vector<128x4xf32>, vector<4x128xf32>, vector<128x128xf32> -> vector<128x128xf32>
    %38 = arith.addf %33, %37 : vector<128x128xf32>
    %c0_49 = arith.constant 0 : index
    %c0_50 = arith.constant 0 : index
    %39 = vector.load %arg11[%c0_49, %c0_50] : memref<128x128xf32, #tpu.memory_space<vmem>>, vector<128x128xf32>
    tpu.vector_store %arg11[%c0_49, %c0_50], %38 {strides = array<i32>} : memref<128x128xf32, #tpu.memory_space<vmem>>, vector<128x128xf32>,
    %c0_51 = arith.constant 0 : index
    %c0_52 = arith.constant 0 : index
    %40 = vector.load %arg11[%c0_51, %c0_52] : memref<128x128xf32, #tpu.memory_space<vmem>>, vector<128x128xf32>
    %c0_53 = arith.constant 0 : index
    %c0_54 = arith.constant 0 : index
    %41 = vector.load %arg7[%c0_53, %c0_54] : memref<128x4xf32, #tpu.memory_space<vmem>>, vector<128x4xf32>
    %c6 = arith.constant 6 : index
    %c0_55 = arith.constant 0 : index
    %c0_56 = arith.constant 0 : index
    %42 = vector.load %arg10[%c6, %c0_55, %c0_56] : memref<9x4x128xf32, #tpu.memory_space<vmem>>, vector<1x4x128xf32>
    %43 = vector.shape_cast %42 : vector<1x4x128xf32> to vector<4x128xf32>
    %cst_57 = arith.constant dense<0.000000e+00> : vector<128x128xf32>
    %44 = tpu.matmul %41, %43, %cst_57 {dimension_numbers = #tpu.dot_dimension_numbers<[1], [0], [0], [1], [0, 0, 1, 1], [], []>} : vector<128x4xf32>, vector<4x128xf32>, vector<128x128xf32> -> vector<128x128xf32>
    %45 = arith.addf %40, %44 : vector<128x128xf32>
    %c0_58 = arith.constant 0 : index
    %c0_59 = arith.constant 0 : index
    %46 = vector.load %arg11[%c0_58, %c0_59] : memref<128x128xf32, #tpu.memory_space<vmem>>, vector<128x128xf32>
    tpu.vector_store %arg11[%c0_58, %c0_59], %45 {strides = array<i32>} : memref<128x128xf32, #tpu.memory_space<vmem>>, vector<128x128xf32>,
    %c0_60 = arith.constant 0 : index
    %c0_61 = arith.constant 0 : index
    %47 = vector.load %arg11[%c0_60, %c0_61] : memref<128x128xf32, #tpu.memory_space<vmem>>, vector<128x128xf32>
    %c0_62 = arith.constant 0 : index
    %c0_63 = arith.constant 0 : index
    %48 = vector.load %arg8[%c0_62, %c0_63] : memref<128x4xf32, #tpu.memory_space<vmem>>, vector<128x4xf32>
    %c7 = arith.constant 7 : index
    %c0_64 = arith.constant 0 : index
    %c0_65 = arith.constant 0 : index
    %49 = vector.load %arg10[%c7, %c0_64, %c0_65] : memref<9x4x128xf32, #tpu.memory_space<vmem>>, vector<1x4x128xf32>
    %50 = vector.shape_cast %49 : vector<1x4x128xf32> to vector<4x128xf32>
    %cst_66 = arith.constant dense<0.000000e+00> : vector<128x128xf32>
    %51 = tpu.matmul %48, %50, %cst_66 {dimension_numbers = #tpu.dot_dimension_numbers<[1], [0], [0], [1], [0, 0, 1, 1], [], []>} : vector<128x4xf32>, vector<4x128xf32>, vector<128x128xf32> -> vector<128x128xf32>
    %52 = arith.addf %47, %51 : vector<128x128xf32>
    %c0_67 = arith.constant 0 : index
    %c0_68 = arith.constant 0 : index
    %53 = vector.load %arg11[%c0_67, %c0_68] : memref<128x128xf32, #tpu.memory_space<vmem>>, vector<128x128xf32>
    tpu.vector_store %arg11[%c0_67, %c0_68], %52 {strides = array<i32>} : memref<128x128xf32, #tpu.memory_space<vmem>>, vector<128x128xf32>,
    %c0_69 = arith.constant 0 : index
    %c0_70 = arith.constant 0 : index
    %54 = vector.load %arg11[%c0_69, %c0_70] : memref<128x128xf32, #tpu.memory_space<vmem>>, vector<128x128xf32>
    %c0_71 = arith.constant 0 : index
    %c0_72 = arith.constant 0 : index
    %55 = vector.load %arg9[%c0_71, %c0_72] : memref<128x4xf32, #tpu.memory_space<vmem>>, vector<128x4xf32>
    %c8 = arith.constant 8 : index
    %c0_73 = arith.constant 0 : index
    %c0_74 = arith.constant 0 : index
    %56 = vector.load %arg10[%c8, %c0_73, %c0_74] : memref<9x4x128xf32, #tpu.memory_space<vmem>>, vector<1x4x128xf32>
    %57 = vector.shape_cast %56 : vector<1x4x128xf32> to vector<4x128xf32>
    %cst_75 = arith.constant dense<0.000000e+00> : vector<128x128xf32>
    %58 = tpu.matmul %55, %57, %cst_75 {dimension_numbers = #tpu.dot_dimension_numbers<[1], [0], [0], [1], [0, 0, 1, 1], [], []>} : vector<128x4xf32>, vector<4x128xf32>, vector<128x128xf32> -> vector<128x128xf32>
    %59 = arith.addf %54, %58 : vector<128x128xf32>
    %c0_76 = arith.constant 0 : index
    %c0_77 = arith.constant 0 : index
    %60 = vector.load %arg11[%c0_76, %c0_77] : memref<128x128xf32, #tpu.memory_space<vmem>>, vector<128x128xf32>
    tpu.vector_store %arg11[%c0_76, %c0_77], %59 {strides = array<i32>} : memref<128x128xf32, #tpu.memory_space<vmem>>, vector<128x128xf32>,
    return
  }
  func.func @transform_0(%arg0: i32) -> (i32, i32) {
    %c0_i32 = arith.constant 0 : i32
    %c0_i32_0 = arith.constant 0 : i32
    return %arg0, %c0_i32 : i32, i32
  }
  func.func @transform_1(%arg0: i32) -> (i32, i32) {
    %c0_i32 = arith.constant 0 : i32
    %c0_i32_0 = arith.constant 0 : i32
    return %arg0, %c0_i32 : i32, i32
  }
  func.func @transform_2(%arg0: i32) -> (i32, i32) {
    %c0_i32 = arith.constant 0 : i32
    %c0_i32_0 = arith.constant 0 : i32
    return %arg0, %c0_i32 : i32, i32
  }
  func.func @transform_3(%arg0: i32) -> (i32, i32) {
    %c0_i32 = arith.constant 0 : i32
    %c0_i32_0 = arith.constant 0 : i32
    return %arg0, %c0_i32 : i32, i32
  }
  func.func @transform_4(%arg0: i32) -> (i32, i32) {
    %c0_i32 = arith.constant 0 : i32
    %c0_i32_0 = arith.constant 0 : i32
    return %arg0, %c0_i32 : i32, i32
  }
  func.func @transform_5(%arg0: i32) -> (i32, i32) {
    %c0_i32 = arith.constant 0 : i32
    %c0_i32_0 = arith.constant 0 : i32
    return %arg0, %c0_i32 : i32, i32
  }
  func.func @transform_6(%arg0: i32) -> (i32, i32) {
    %c0_i32 = arith.constant 0 : i32
    %c0_i32_0 = arith.constant 0 : i32
    return %arg0, %c0_i32 : i32, i32
  }
  func.func @transform_7(%arg0: i32) -> (i32, i32) {
    %c0_i32 = arith.constant 0 : i32
    %c0_i32_0 = arith.constant 0 : i32
    return %arg0, %c0_i32 : i32, i32
  }
  func.func @transform_8(%arg0: i32) -> (i32, i32) {
    %c0_i32 = arith.constant 0 : i32
    %c0_i32_0 = arith.constant 0 : i32
    return %arg0, %c0_i32 : i32, i32
  }
  func.func @transform_9(%arg0: i32) -> (i32, i32, i32) {
    %c0_i32 = arith.constant 0 : i32
    %c0_i32_0 = arith.constant 0 : i32
    %c0_i32_1 = arith.constant 0 : i32
    %c0_i32_2 = arith.constant 0 : i32
    return %c0_i32, %c0_i32_0, %c0_i32_1 : i32, i32, i32
  }
  func.func @transform_10(%arg0: i32) -> (i32, i32) {
    %c0_i32 = arith.constant 0 : i32
    %c0_i32_0 = arith.constant 0 : i32
    return %arg0, %c0_i32 : i32, i32
  }
}

</mosaic_0001>

<llo_original>
// kernel: down_forward.1
$region0: #{down_forward.1}
  #allocation0 [shape = 'u32[]', space=smem, size = 0x4, offset = 0x4, fixed_abs, tag = 'smem constant byte address 0x4 - core index']
  #allocation1 [shape = 'u32[72,128]{1,0:T(1,128)}', space=vmem, size = 0x9000, scoped, tag = 'internal scratch']
  %s0 = inlined_call_operand.vmem [shape: f32[128,4], index: 0, kind: input, shape index: {}]
  %s1 = inlined_call_operand.vmem [shape: f32[128,4], index: 1, kind: input, shape index: {}]
  %s2 = inlined_call_operand.vmem [shape: f32[128,4], index: 2, kind: input, shape index: {}]
  %s3 = inlined_call_operand.vmem [shape: f32[128,4], index: 3, kind: input, shape index: {}]
  %s4 = inlined_call_operand.vmem [shape: f32[128,4], index: 4, kind: input, shape index: {}]
  %s5 = inlined_call_operand.vmem [shape: f32[128,4], index: 5, kind: input, shape index: {}]
  %s6 = inlined_call_operand.vmem [shape: f32[128,4], index: 6, kind: input, shape index: {}]
  %s7 = inlined_call_operand.vmem [shape: f32[128,4], index: 7, kind: input, shape index: {}]
  %s8 = inlined_call_operand.vmem [shape: f32[128,4], index: 8, kind: input, shape index: {}]
  %s9 = inlined_call_operand.vmem [shape: f32[9,4,128], index: 9, kind: input, shape index: {}]
  %s10 = inlined_call_operand.vmem [shape: f32[128,128], index: 10, kind: output, shape index: {}]
  %s11 = sld [smem:[#allocation0]]
  $region50: #{down_forward.1} parent=0
    _
  %s13 = ssub.s32 1, %s11
  %s14 = scalar_select 0, %s13, %s11
  // Predicated region
  $region2: #{down_forward.1} parent=0 // pred_check
    _
  $region3: #{down_forward.1} parent=0 // pred_check_branch
    %16 = sbr.rel (0) target = $region5
  $region4: #{down_forward.1} parent=0 // pred_region
    _
  $region5: #{down_forward.1} parent=0 // pred_fallthru
    _
  // Predicated region
  $region6: #{down_forward.1} parent=0 // pred_check
    _
  $region7: #{down_forward.1} parent=0 // pred_check_branch
    %18 = sbr.rel (0) target = $region9
  $region8: #{down_forward.1} parent=0 // pred_region
    _
  $region9: #{down_forward.1} parent=0 // pred_fallthru
    _
  // Predicated region
  $region10: #{down_forward.1} parent=0 // pred_check
    _
  $region11: #{down_forward.1} parent=0 // pred_check_branch
    %20 = sbr.rel (0) target = $region13
  $region12: #{down_forward.1} parent=0 // pred_region
    _
  $region13: #{down_forward.1} parent=0 // pred_fallthru
    _
  // Predicated region
  $region14: #{down_forward.1} parent=0 // pred_check
    _
  $region15: #{down_forward.1} parent=0 // pred_check_branch
    %22 = sbr.rel (0) target = $region17
  $region16: #{down_forward.1} parent=0 // pred_region
    _
  $region17: #{down_forward.1} parent=0 // pred_fallthru
    _
  // Predicated region
  $region18: #{down_forward.1} parent=0 // pred_check
    _
  $region19: #{down_forward.1} parent=0 // pred_check_branch
    %24 = sbr.rel (0) target = $region21
  $region20: #{down_forward.1} parent=0 // pred_region
    _
  $region21: #{down_forward.1} parent=0 // pred_fallthru
    _
  // Predicated region
  $region22: #{down_forward.1} parent=0 // pred_check
    _
  $region23: #{down_forward.1} parent=0 // pred_check_branch
    %26 = sbr.rel (0) target = $region25
  $region24: #{down_forward.1} parent=0 // pred_region
    _
  $region25: #{down_forward.1} parent=0 // pred_fallthru
    _
  // Predicated region
  $region26: #{down_forward.1} parent=0 // pred_check
    _
  $region27: #{down_forward.1} parent=0 // pred_check_branch
    %28 = sbr.rel (0) target = $region29
  $region28: #{down_forward.1} parent=0 // pred_region
    _
  $region29: #{down_forward.1} parent=0 // pred_fallthru
    _
  // Predicated region
  $region30: #{down_forward.1} parent=0 // pred_check
    _
  $region31: #{down_forward.1} parent=0 // pred_check_branch
    %30 = sbr.rel (0) target = $region33
  $region32: #{down_forward.1} parent=0 // pred_region
    _
  $region33: #{down_forward.1} parent=0 // pred_fallthru
    _
  // Predicated region
  $region34: #{down_forward.1} parent=0 // pred_check
    _
  $region35: #{down_forward.1} parent=0 // pred_check_branch
    %32 = sbr.rel (0) target = $region37
  $region36: #{down_forward.1} parent=0 // pred_region
    _
  $region37: #{down_forward.1} parent=0 // pred_fallthru
    _
  // Predicated region
  $region38: #{down_forward.1} parent=0 // pred_check
    _
  $region39: #{down_forward.1} parent=0 // pred_check_branch
    %34 = sbr.rel (0) target = $region41
  $region40: #{down_forward.1} parent=0 // pred_region
    _
  $region41: #{down_forward.1} parent=0 // pred_fallthru
    _
  %v35 = vld [vmem:[%s0] sm:$0xff]
  %v36 = vld [vmem:[%s0 + $0x8] sm:$0xff]
  %v37 = vld [vmem:[%s0 + $0x10] sm:$0xff]
  %v38 = vld [vmem:[%s0 + $0x18] sm:$0xff]
  %v39 = vld [vmem:[%s0 + $0x20] sm:$0xff]
  %v40 = vld [vmem:[%s0 + $0x28] sm:$0xff]
  %v41 = vld [vmem:[%s0 + $0x30] sm:$0xff]
  %v42 = vld [vmem:[%s0 + $0x38] sm:$0xff]
  %v43 = vld [vmem:[%s0 + $0x40] sm:$0xff]
  %v44 = vld [vmem:[%s0 + $0x48] sm:$0xff]
  %v45 = vld [vmem:[%s0 + $0x50] sm:$0xff]
  %v46 = vld [vmem:[%s0 + $0x58] sm:$0xff]
  %v47 = vld [vmem:[%s0 + $0x60] sm:$0xff]
  %v48 = vld [vmem:[%s0 + $0x68] sm:$0xff]
  %v49 = vld [vmem:[%s0 + $0x70] sm:$0xff]
  %v50 = vld [vmem:[%s0 + $0x78] sm:$0xff]
  %v51 = vld [vmem:[%s9] sm:$0xf]
  %vm52 = vcmask 31744
  %v54 = vsel %vm52, %v35, 0
  %v57 = vsel %vm52, %v36, 0
  %v60 = vsel %vm52, %v37, 0
  %v63 = vsel %vm52, %v38, 0
  %v66 = vsel %vm52, %v39, 0
  %v69 = vsel %vm52, %v40, 0
  %v72 = vsel %vm52, %v41, 0
  %v75 = vsel %vm52, %v42, 0
  %v78 = vsel %vm52, %v43, 0
  %v81 = vsel %vm52, %v44, 0
  %v84 = vsel %vm52, %v45, 0
  %v87 = vsel %vm52, %v46, 0
  %v90 = vsel %vm52, %v47, 0
  %v93 = vsel %vm52, %v48, 0
  %v96 = vsel %vm52, %v49, 0
  %v99 = vsel %vm52, %v50, 0
  %vm101 = vcmask 1043456
  %v103 = vsel %vm101, %v51, 0
  %105 = vmatpush.msra.mxu0 0.0
  %106 = vmatpush.msra.mxu0 0.0
  %107 = vmatpush.msra.mxu0 0.0
  %108 = vmatpush.msra.mxu0 0.0
  %109 = vmatpush.msra.mxu0 0.0
  %110 = vmatpush.msra.mxu0 0.0
  %111 = vmatpush.msra.mxu0 0.0
  %112 = vmatpush.msra.mxu0 0.0
  %113 = vmatpush.msra.mxu0 0.0
  %114 = vmatpush.msra.mxu0 0.0
  %115 = vmatpush.msra.mxu0 0.0
  %116 = vmatpush.msra.mxu0 0.0
  %117 = vmatpush.msra.mxu0 0.0
  %118 = vmatpush.msra.mxu0 0.0
  %119 = vmatpush.msra.mxu0 0.0
  %120 = vmatpush.msra.mxu0 %v103
  %121 = vmatmul.f32.gmra.mxu0 %v54
  %v122 = vpop.f32.mrf.mxu0
  %v123 = vadd.f32 0.0, %v122
  %124 = vmatmul.f32.gmra.mxu0 %v57
  %v125 = vpop.f32.mrf.mxu0
  %v126 = vadd.f32 0.0, %v125
  %127 = vmatmul.f32.gmra.mxu0 %v60
  %v128 = vpop.f32.mrf.mxu0
  %v129 = vadd.f32 0.0, %v128
  %130 = vmatmul.f32.gmra.mxu0 %v63
  %v131 = vpop.f32.mrf.mxu0
  %v132 = vadd.f32 0.0, %v131
  %133 = vmatmul.f32.gmra.mxu0 %v66
  %v134 = vpop.f32.mrf.mxu0
  %v135 = vadd.f32 0.0, %v134
  %136 = vmatmul.f32.gmra.mxu0 %v69
  %v137 = vpop.f32.mrf.mxu0
  %v138 = vadd.f32 0.0, %v137
  %139 = vmatmul.f32.gmra.mxu0 %v72
  %v140 = vpop.f32.mrf.mxu0
  %v141 = vadd.f32 0.0, %v140
  %142 = vmatmul.f32.gmra.mxu0 %v75
  %v143 = vpop.f32.mrf.mxu0
  %v144 = vadd.f32 0.0, %v143
  %145 = vmatmul.f32.gmra.mxu0 %v78
  %v146 = vpop.f32.mrf.mxu0
  %v147 = vadd.f32 0.0, %v146
  %148 = vmatmul.f32.gmra.mxu0 %v81
  %v149 = vpop.f32.mrf.mxu0
  %v150 = vadd.f32 0.0, %v149
  %151 = vmatmul.f32.gmra.mxu0 %v84
  %v152 = vpop.f32.mrf.mxu0
  %v153 = vadd.f32 0.0, %v152
  %154 = vmatmul.f32.gmra.mxu0 %v87
  %v155 = vpop.f32.mrf.mxu0
  %v156 = vadd.f32 0.0, %v155
  %157 = vmatmul.f32.gmra.mxu0 %v90
  %v158 = vpop.f32.mrf.mxu0
  %v159 = vadd.f32 0.0, %v158
  %160 = vmatmul.f32.gmra.mxu0 %v93
  %v161 = vpop.f32.mrf.mxu0
  %v162 = vadd.f32 0.0, %v161
  %163 = vmatmul.f32.gmra.mxu0 %v96
  %v164 = vpop.f32.mrf.mxu0
  %v165 = vadd.f32 0.0, %v164
  %166 = vmatmul.f32.gmra.mxu0 %v99
  %v167 = vpop.f32.mrf.mxu0
  %v168 = vadd.f32 0.0, %v167
  %169 = vdwg.mxu0
  %170 = vst [vmem:[%s10] sm:$0xff] %v123
  %171 = vst [vmem:[%s10 + $0x8] sm:$0xff] %v126
  %172 = vst [vmem:[%s10 + $0x10] sm:$0xff] %v129
  %173 = vst [vmem:[%s10 + $0x18] sm:$0xff] %v132
  %174 = vst [vmem:[%s10 + $0x20] sm:$0xff] %v135
  %175 = vst [vmem:[%s10 + $0x28] sm:$0xff] %v138
  %176 = vst [vmem:[%s10 + $0x30] sm:$0xff] %v141
  %177 = vst [vmem:[%s10 + $0x38] sm:$0xff] %v144
  %178 = vst [vmem:[%s10 + $0x40] sm:$0xff] %v147
  %179 = vst [vmem:[%s10 + $0x48] sm:$0xff] %v150
  %180 = vst [vmem:[%s10 + $0x50] sm:$0xff] %v153
  %181 = vst [vmem:[%s10 + $0x58] sm:$0xff] %v156
  %182 = vst [vmem:[%s10 + $0x60] sm:$0xff] %v159
  %183 = vst [vmem:[%s10 + $0x68] sm:$0xff] %v162
  %184 = vst [vmem:[%s10 + $0x70] sm:$0xff] %v165
  %185 = vst [vmem:[%s10 + $0x78] sm:$0xff] %v168
  %v186 = vld [vmem:[%s10] sm:$0xff]
  %v187 = vld [vmem:[%s10 + $0x8] sm:$0xff]
  %v188 = vld [vmem:[%s10 + $0x10] sm:$0xff]
  %v189 = vld [vmem:[%s10 + $0x18] sm:$0xff]
  %v190 = vld [vmem:[%s10 + $0x20] sm:$0xff]
  %v191 = vld [vmem:[%s10 + $0x28] sm:$0xff]
  %v192 = vld [vmem:[%s10 + $0x30] sm:$0xff]
  %v193 = vld [vmem:[%s10 + $0x38] sm:$0xff]
  %v194 = vld [vmem:[%s10 + $0x40] sm:$0xff]
  %v195 = vld [vmem:[%s10 + $0x48] sm:$0xff]
  %v196 = vld [vmem:[%s10 + $0x50] sm:$0xff]
  %v197 = vld [vmem:[%s10 + $0x58] sm:$0xff]
  %v198 = vld [vmem:[%s10 + $0x60] sm:$0xff]
  %v199 = vld [vmem:[%s10 + $0x68] sm:$0xff]
  %v200 = vld [vmem:[%s10 + $0x70] sm:$0xff]
  %v201 = vld [vmem:[%s10 + $0x78] sm:$0xff]
  %v202 = vld [vmem:[%s1] sm:$0xff]
  %v203 = vld [vmem:[%s1 + $0x8] sm:$0xff]
  %v204 = vld [vmem:[%s1 + $0x10] sm:$0xff]
  %v205 = vld [vmem:[%s1 + $0x18] sm:$0xff]
  %v206 = vld [vmem:[%s1 + $0x20] sm:$0xff]
  %v207 = vld [vmem:[%s1 + $0x28] sm:$0xff]
  %v208 = vld [vmem:[%s1 + $0x30] sm:$0xff]
  %v209 = vld [vmem:[%s1 + $0x38] sm:$0xff]
  %v210 = vld [vmem:[%s1 + $0x40] sm:$0xff]
  %v211 = vld [vmem:[%s1 + $0x48] sm:$0xff]
  %v212 = vld [vmem:[%s1 + $0x50] sm:$0xff]
  %v213 = vld [vmem:[%s1 + $0x58] sm:$0xff]
  %v214 = vld [vmem:[%s1 + $0x60] sm:$0xff]
  %v215 = vld [vmem:[%s1 + $0x68] sm:$0xff]
  %v216 = vld [vmem:[%s1 + $0x70] sm:$0xff]
  %v217 = vld [vmem:[%s1 + $0x78] sm:$0xff]
  %s218 = scalar_lea.vmem %s9, 4
  %v219 = vld [vmem:[%s218] sm:$0xf]
  %v221 = vsel %vm52, %v202, 0
  %v224 = vsel %vm52, %v203, 0
  %v227 = vsel %vm52, %v204, 0
  %v230 = vsel %vm52, %v205, 0
  %v233 = vsel %vm52, %v206, 0
  %v236 = vsel %vm52, %v207, 0
  %v239 = vsel %vm52, %v208, 0
  %v242 = vsel %vm52, %v209, 0
  %v245 = vsel %vm52, %v210, 0
  %v248 = vsel %vm52, %v211, 0
  %v251 = vsel %vm52, %v212, 0
  %v254 = vsel %vm52, %v213, 0
  %v257 = vsel %vm52, %v214, 0
  %v260 = vsel %vm52, %v215, 0
  %v263 = vsel %vm52, %v216, 0
  %v266 = vsel %vm52, %v217, 0
  %v269 = vsel %vm101, %v219, 0
  %271 = vmatpush.msra.mxu0 0.0
  %272 = vmatpush.msra.mxu0 0.0
  %273 = vmatpush.msra.mxu0 0.0
  %274 = vmatpush.msra.mxu0 0.0
  %275 = vmatpush.msra.mxu0 0.0
  %276 = vmatpush.msra.mxu0 0.0
  %277 = vmatpush.msra.mxu0 0.0
  %278 = vmatpush.msra.mxu0 0.0
  %279 = vmatpush.msra.mxu0 0.0
  %280 = vmatpush.msra.mxu0 0.0
  %281 = vmatpush.msra.mxu0 0.0
  %282 = vmatpush.msra.mxu0 0.0
  %283 = vmatpush.msra.mxu0 0.0
  %284 = vmatpush.msra.mxu0 0.0
  %285 = vmatpush.msra.mxu0 0.0
  %286 = vmatpush.msra.mxu0 %v269
  %287 = vmatmul.f32.gmra.mxu0 %v221
  %v288 = vpop.f32.mrf.mxu0
  %v289 = vadd.f32 0.0, %v288
  %290 = vmatmul.f32.gmra.mxu0 %v224
  %v291 = vpop.f32.mrf.mxu0
  %v292 = vadd.f32 0.0, %v291
  %293 = vmatmul.f32.gmra.mxu0 %v227
  %v294 = vpop.f32.mrf.mxu0
  %v295 = vadd.f32 0.0, %v294
  %296 = vmatmul.f32.gmra.mxu0 %v230
  %v297 = vpop.f32.mrf.mxu0
  %v298 = vadd.f32 0.0, %v297
  %299 = vmatmul.f32.gmra.mxu0 %v233
  %v300 = vpop.f32.mrf.mxu0
  %v301 = vadd.f32 0.0, %v300
  %302 = vmatmul.f32.gmra.mxu0 %v236
  %v303 = vpop.f32.mrf.mxu0
  %v304 = vadd.f32 0.0, %v303
  %305 = vmatmul.f32.gmra.mxu0 %v239
  %v306 = vpop.f32.mrf.mxu0
  %v307 = vadd.f32 0.0, %v306
  %308 = vmatmul.f32.gmra.mxu0 %v242
  %v309 = vpop.f32.mrf.mxu0
  %v310 = vadd.f32 0.0, %v309
  %311 = vmatmul.f32.gmra.mxu0 %v245
  %v312 = vpop.f32.mrf.mxu0
  %v313 = vadd.f32 0.0, %v312
  %314 = vmatmul.f32.gmra.mxu0 %v248
  %v315 = vpop.f32.mrf.mxu0
  %v316 = vadd.f32 0.0, %v315
  %317 = vmatmul.f32.gmra.mxu0 %v251
  %v318 = vpop.f32.mrf.mxu0
  %v319 = vadd.f32 0.0, %v318
  %320 = vmatmul.f32.gmra.mxu0 %v254
  %v321 = vpop.f32.mrf.mxu0
  %v322 = vadd.f32 0.0, %v321
  %323 = vmatmul.f32.gmra.mxu0 %v257
  %v324 = vpop.f32.mrf.mxu0
  %v325 = vadd.f32 0.0, %v324
  %326 = vmatmul.f32.gmra.mxu0 %v260
  %v327 = vpop.f32.mrf.mxu0
  %v328 = vadd.f32 0.0, %v327
  %329 = vmatmul.f32.gmra.mxu0 %v263
  %v330 = vpop.f32.mrf.mxu0
  %v331 = vadd.f32 0.0, %v330
  %332 = vmatmul.f32.gmra.mxu0 %v266
  %v333 = vpop.f32.mrf.mxu0
  %v334 = vadd.f32 0.0, %v333
  %335 = vdwg.mxu0
  %v336 = vadd.f32 %v186, %v289
  %v337 = vadd.f32 %v187, %v292
  %v338 = vadd.f32 %v188, %v295
  %v339 = vadd.f32 %v189, %v298
  %v340 = vadd.f32 %v190, %v301
  %v341 = vadd.f32 %v191, %v304
  %v342 = vadd.f32 %v192, %v307
  %v343 = vadd.f32 %v193, %v310
  %v344 = vadd.f32 %v194, %v313
  %v345 = vadd.f32 %v195, %v316
  %v346 = vadd.f32 %v196, %v319
  %v347 = vadd.f32 %v197, %v322
  %v348 = vadd.f32 %v198, %v325
  %v349 = vadd.f32 %v199, %v328
  %v350 = vadd.f32 %v200, %v331
  %v351 = vadd.f32 %v201, %v334
  %352 = vst [vmem:[%s10] sm:$0xff] %v336
  %353 = vst [vmem:[%s10 + $0x8] sm:$0xff] %v337
  %354 = vst [vmem:[%s10 + $0x10] sm:$0xff] %v338
  %355 = vst [vmem:[%s10 + $0x18] sm:$0xff] %v339
  %356 = vst [vmem:[%s10 + $0x20] sm:$0xff] %v340
  %357 = vst [vmem:[%s10 + $0x28] sm:$0xff] %v341
  %358 = vst [vmem:[%s10 + $0x30] sm:$0xff] %v342
  %359 = vst [vmem:[%s10 + $0x38] sm:$0xff] %v343
  %360 = vst [vmem:[%s10 + $0x40] sm:$0xff] %v344
  %361 = vst [vmem:[%s10 + $0x48] sm:$0xff] %v345
  %362 = vst [vmem:[%s10 + $0x50] sm:$0xff] %v346
  %363 = vst [vmem:[%s10 + $0x58] sm:$0xff] %v347
  %364 = vst [vmem:[%s10 + $0x60] sm:$0xff] %v348
  %365 = vst [vmem:[%s10 + $0x68] sm:$0xff] %v349
  %366 = vst [vmem:[%s10 + $0x70] sm:$0xff] %v350
  %367 = vst [vmem:[%s10 + $0x78] sm:$0xff] %v351
  %v368 = vld [vmem:[%s10] sm:$0xff]
  %v369 = vld [vmem:[%s10 + $0x8] sm:$0xff]
  %v370 = vld [vmem:[%s10 + $0x10] sm:$0xff]
  %v371 = vld [vmem:[%s10 + $0x18] sm:$0xff]
  %v372 = vld [vmem:[%s10 + $0x20] sm:$0xff]
  %v373 = vld [vmem:[%s10 + $0x28] sm:$0xff]
  %v374 = vld [vmem:[%s10 + $0x30] sm:$0xff]
  %v375 = vld [vmem:[%s10 + $0x38] sm:$0xff]
  %v376 = vld [vmem:[%s10 + $0x40] sm:$0xff]
  %v377 = vld [vmem:[%s10 + $0x48] sm:$0xff]
  %v378 = vld [vmem:[%s10 + $0x50] sm:$0xff]
  %v379 = vld [vmem:[%s10 + $0x58] sm:$0xff]
  %v380 = vld [vmem:[%s10 + $0x60] sm:$0xff]
  %v381 = vld [vmem:[%s10 + $0x68] sm:$0xff]
  %v382 = vld [vmem:[%s10 + $0x70] sm:$0xff]
  %v383 = vld [vmem:[%s10 + $0x78] sm:$0xff]
  %v384 = vld [vmem:[%s2] sm:$0xff]
  %v385 = vld [vmem:[%s2 + $0x8] sm:$0xff]
  %v386 = vld [vmem:[%s2 + $0x10] sm:$0xff]
  %v387 = vld [vmem:[%s2 + $0x18] sm:$0xff]
  %v388 = vld [vmem:[%s2 + $0x20] sm:$0xff]
  %v389 = vld [vmem:[%s2 + $0x28] sm:$0xff]
  %v390 = vld [vmem:[%s2 + $0x30] sm:$0xff]
  %v391 = vld [vmem:[%s2 + $0x38] sm:$0xff]
  %v392 = vld [vmem:[%s2 + $0x40] sm:$0xff]
  %v393 = vld [vmem:[%s2 + $0x48] sm:$0xff]
  %v394 = vld [vmem:[%s2 + $0x50] sm:$0xff]
  %v395 = vld [vmem:[%s2 + $0x58] sm:$0xff]
  %v396 = vld [vmem:[%s2 + $0x60] sm:$0xff]
  %v397 = vld [vmem:[%s2 + $0x68] sm:$0xff]
  %v398 = vld [vmem:[%s2 + $0x70] sm:$0xff]
  %v399 = vld [vmem:[%s2 + $0x78] sm:$0xff]
  %s400 = scalar_lea.vmem %s9, 8
  %v401 = vld [vmem:[%s400] sm:$0xf]
  %v403 = vsel %vm52, %v384, 0
  %v406 = vsel %vm52, %v385, 0
  %v409 = vsel %vm52, %v386, 0
  %v412 = vsel %vm52, %v387, 0
  %v415 = vsel %vm52, %v388, 0
  %v418 = vsel %vm52, %v389, 0
  %v421 = vsel %vm52, %v390, 0
  %v424 = vsel %vm52, %v391, 0
  %v427 = vsel %vm52, %v392, 0
  %v430 = vsel %vm52, %v393, 0
  %v433 = vsel %vm52, %v394, 0
  %v436 = vsel %vm52, %v395, 0
  %v439 = vsel %vm52, %v396, 0
  %v442 = vsel %vm52, %v397, 0
  %v445 = vsel %vm52, %v398, 0
  %v448 = vsel %vm52, %v399, 0
  %v451 = vsel %vm101, %v401, 0
  %453 = vmatpush.msra.mxu0 0.0
  %454 = vmatpush.msra.mxu0 0.0
  %455 = vmatpush.msra.mxu0 0.0
  %456 = vmatpush.msra.mxu0 0.0
  %457 = vmatpush.msra.mxu0 0.0
  %458 = vmatpush.msra.mxu0 0.0
  %459 = vmatpush.msra.mxu0 0.0
  %460 = vmatpush.msra.mxu0 0.0
  %461 = vmatpush.msra.mxu0 0.0
  %462 = vmatpush.msra.mxu0 0.0
  %463 = vmatpush.msra.mxu0 0.0
  %464 = vmatpush.msra.mxu0 0.0
  %465 = vmatpush.msra.mxu0 0.0
  %466 = vmatpush.msra.mxu0 0.0
  %467 = vmatpush.msra.mxu0 0.0
  %468 = vmatpush.msra.mxu0 %v451
  %469 = vmatmul.f32.gmra.mxu0 %v403
  %v470 = vpop.f32.mrf.mxu0
  %v471 = vadd.f32 0.0, %v470
  %472 = vmatmul.f32.gmra.mxu0 %v406
  %v473 = vpop.f32.mrf.mxu0
  %v474 = vadd.f32 0.0, %v473
  %475 = vmatmul.f32.gmra.mxu0 %v409
  %v476 = vpop.f32.mrf.mxu0
  %v477 = vadd.f32 0.0, %v476
  %478 = vmatmul.f32.gmra.mxu0 %v412
  %v479 = vpop.f32.mrf.mxu0
  %v480 = vadd.f32 0.0, %v479
  %481 = vmatmul.f32.gmra.mxu0 %v415
  %v482 = vpop.f32.mrf.mxu0
  %v483 = vadd.f32 0.0, %v482
  %484 = vmatmul.f32.gmra.mxu0 %v418
  %v485 = vpop.f32.mrf.mxu0
  %v486 = vadd.f32 0.0, %v485
  %487 = vmatmul.f32.gmra.mxu0 %v421
  %v488 = vpop.f32.mrf.mxu0
  %v489 = vadd.f32 0.0, %v488
  %490 = vmatmul.f32.gmra.mxu0 %v424
  %v491 = vpop.f32.mrf.mxu0
  %v492 = vadd.f32 0.0, %v491
  %493 = vmatmul.f32.gmra.mxu0 %v427
  %v494 = vpop.f32.mrf.mxu0
  %v495 = vadd.f32 0.0, %v494
  %496 = vmatmul.f32.gmra.mxu0 %v430
  %v497 = vpop.f32.mrf.mxu0
  %v498 = vadd.f32 0.0, %v497
  %499 = vmatmul.f32.gmra.mxu0 %v433
  %v500 = vpop.f32.mrf.mxu0
  %v501 = vadd.f32 0.0, %v500
  %502 = vmatmul.f32.gmra.mxu0 %v436
  %v503 = vpop.f32.mrf.mxu0
  %v504 = vadd.f32 0.0, %v503
  %505 = vmatmul.f32.gmra.mxu0 %v439
  %v506 = vpop.f32.mrf.mxu0
  %v507 = vadd.f32 0.0, %v506
  %508 = vmatmul.f32.gmra.mxu0 %v442
  %v509 = vpop.f32.mrf.mxu0
  %v510 = vadd.f32 0.0, %v509
  %511 = vmatmul.f32.gmra.mxu0 %v445
  %v512 = vpop.f32.mrf.mxu0
  %v513 = vadd.f32 0.0, %v512
  %514 = vmatmul.f32.gmra.mxu0 %v448
  %v515 = vpop.f32.mrf.mxu0
  %v516 = vadd.f32 0.0, %v515
  %517 = vdwg.mxu0
  %v518 = vadd.f32 %v368, %v471
  %v519 = vadd.f32 %v369, %v474
  %v520 = vadd.f32 %v370, %v477
  %v521 = vadd.f32 %v371, %v480
  %v522 = vadd.f32 %v372, %v483
  %v523 = vadd.f32 %v373, %v486
  %v524 = vadd.f32 %v374, %v489
  %v525 = vadd.f32 %v375, %v492
  %v526 = vadd.f32 %v376, %v495
  %v527 = vadd.f32 %v377, %v498
  %v528 = vadd.f32 %v378, %v501
  %v529 = vadd.f32 %v379, %v504
  %v530 = vadd.f32 %v380, %v507
  %v531 = vadd.f32 %v381, %v510
  %v532 = vadd.f32 %v382, %v513
  %v533 = vadd.f32 %v383, %v516
  %534 = vst [vmem:[%s10] sm:$0xff] %v518
  %535 = vst [vmem:[%s10 + $0x8] sm:$0xff] %v519
  %536 = vst [vmem:[%s10 + $0x10] sm:$0xff] %v520
  %537 = vst [vmem:[%s10 + $0x18] sm:$0xff] %v521
  %538 = vst [vmem:[%s10 + $0x20] sm:$0xff] %v522
  %539 = vst [vmem:[%s10 + $0x28] sm:$0xff] %v523
  %540 = vst [vmem:[%s10 + $0x30] sm:$0xff] %v524
  %541 = vst [vmem:[%s10 + $0x38] sm:$0xff] %v525
  %542 = vst [vmem:[%s10 + $0x40] sm:$0xff] %v526
  %543 = vst [vmem:[%s10 + $0x48] sm:$0xff] %v527
  %544 = vst [vmem:[%s10 + $0x50] sm:$0xff] %v528
  %545 = vst [vmem:[%s10 + $0x58] sm:$0xff] %v529
  %546 = vst [vmem:[%s10 + $0x60] sm:$0xff] %v530
  %547 = vst [vmem:[%s10 + $0x68] sm:$0xff] %v531
  %548 = vst [vmem:[%s10 + $0x70] sm:$0xff] %v532
  %549 = vst [vmem:[%s10 + $0x78] sm:$0xff] %v533
  %v550 = vld [vmem:[%s10] sm:$0xff]
  %v551 = vld [vmem:[%s10 + $0x8] sm:$0xff]
  %v552 = vld [vmem:[%s10 + $0x10] sm:$0xff]
  %v553 = vld [vmem:[%s10 + $0x18] sm:$0xff]
  %v554 = vld [vmem:[%s10 + $0x20] sm:$0xff]
  %v555 = vld [vmem:[%s10 + $0x28] sm:$0xff]
  %v556 = vld [vmem:[%s10 + $0x30] sm:$0xff]
  %v557 = vld [vmem:[%s10 + $0x38] sm:$0xff]
  %v558 = vld [vmem:[%s10 + $0x40] sm:$0xff]
  %v559 = vld [vmem:[%s10 + $0x48] sm:$0xff]
  %v560 = vld [vmem:[%s10 + $0x50] sm:$0xff]
  %v561 = vld [vmem:[%s10 + $0x58] sm:$0xff]
  %v562 = vld [vmem:[%s10 + $0x60] sm:$0xff]
  %v563 = vld [vmem:[%s10 + $0x68] sm:$0xff]
  %v564 = vld [vmem:[%s10 + $0x70] sm:$0xff]
  %v565 = vld [vmem:[%s10 + $0x78] sm:$0xff]
  %v566 = vld [vmem:[%s3] sm:$0xff]
  %v567 = vld [vmem:[%s3 + $0x8] sm:$0xff]
  %v568 = vld [vmem:[%s3 + $0x10] sm:$0xff]
  %v569 = vld [vmem:[%s3 + $0x18] sm:$0xff]
  %v570 = vld [vmem:[%s3 + $0x20] sm:$0xff]
  %v571 = vld [vmem:[%s3 + $0x28] sm:$0xff]
  %v572 = vld [vmem:[%s3 + $0x30] sm:$0xff]
  %v573 = vld [vmem:[%s3 + $0x38] sm:$0xff]
  %v574 = vld [vmem:[%s3 + $0x40] sm:$0xff]
  %v575 = vld [vmem:[%s3 + $0x48] sm:$0xff]
  %v576 = vld [vmem:[%s3 + $0x50] sm:$0xff]
  %v577 = vld [vmem:[%s3 + $0x58] sm:$0xff]
  %v578 = vld [vmem:[%s3 + $0x60] sm:$0xff]
  %v579 = vld [vmem:[%s3 + $0x68] sm:$0xff]
  %v580 = vld [vmem:[%s3 + $0x70] sm:$0xff]
  %v581 = vld [vmem:[%s3 + $0x78] sm:$0xff]
  %s582 = scalar_lea.vmem %s9, 12
  %v583 = vld [vmem:[%s582] sm:$0xf]
  %v585 = vsel %vm52, %v566, 0
  %v588 = vsel %vm52, %v567, 0
  %v591 = vsel %vm52, %v568, 0
  %v594 = vsel %vm52, %v569, 0
  %v597 = vsel %vm52, %v570, 0
  %v600 = vsel %vm52, %v571, 0
  %v603 = vsel %vm52, %v572, 0
  %v606 = vsel %vm52, %v573, 0
  %v609 = vsel %vm52, %v574, 0
  %v612 = vsel %vm52, %v575, 0
  %v615 = vsel %vm52, %v576, 0
  %v618 = vsel %vm52, %v577, 0
  %v621 = vsel %vm52, %v578, 0
  %v624 = vsel %vm52, %v579, 0
  %v627 = vsel %vm52, %v580, 0
  %v630 = vsel %vm52, %v581, 0
  %v633 = vsel %vm101, %v583, 0
  %635 = vmatpush.msra.mxu0 0.0
  %636 = vmatpush.msra.mxu0 0.0
  %637 = vmatpush.msra.mxu0 0.0
  %638 = vmatpush.msra.mxu0 0.0
  %639 = vmatpush.msra.mxu0 0.0
  %640 = vmatpush.msra.mxu0 0.0
  %641 = vmatpush.msra.mxu0 0.0
  %642 = vmatpush.msra.mxu0 0.0
  %643 = vmatpush.msra.mxu0 0.0
  %644 = vmatpush.msra.mxu0 0.0
  %645 = vmatpush.msra.mxu0 0.0
  %646 = vmatpush.msra.mxu0 0.0
  %647 = vmatpush.msra.mxu0 0.0
  %648 = vmatpush.msra.mxu0 0.0
  %649 = vmatpush.msra.mxu0 0.0
  %650 = vmatpush.msra.mxu0 %v633
  %651 = vmatmul.f32.gmra.mxu0 %v585
  %v652 = vpop.f32.mrf.mxu0
  %v653 = vadd.f32 0.0, %v652
  %654 = vmatmul.f32.gmra.mxu0 %v588
  %v655 = vpop.f32.mrf.mxu0
  %v656 = vadd.f32 0.0, %v655
  %657 = vmatmul.f32.gmra.mxu0 %v591
  %v658 = vpop.f32.mrf.mxu0
  %v659 = vadd.f32 0.0, %v658
  %660 = vmatmul.f32.gmra.mxu0 %v594
  %v661 = vpop.f32.mrf.mxu0
  %v662 = vadd.f32 0.0, %v661
  %663 = vmatmul.f32.gmra.mxu0 %v597
  %v664 = vpop.f32.mrf.mxu0
  %v665 = vadd.f32 0.0, %v664
  %666 = vmatmul.f32.gmra.mxu0 %v600
  %v667 = vpop.f32.mrf.mxu0
  %v668 = vadd.f32 0.0, %v667
  %669 = vmatmul.f32.gmra.mxu0 %v603
  %v670 = vpop.f32.mrf.mxu0
  %v671 = vadd.f32 0.0, %v670
  %672 = vmatmul.f32.gmra.mxu0 %v606
  %v673 = vpop.f32.mrf.mxu0
  %v674 = vadd.f32 0.0, %v673
  %675 = vmatmul.f32.gmra.mxu0 %v609
  %v676 = vpop.f32.mrf.mxu0
  %v677 = vadd.f32 0.0, %v676
  %678 = vmatmul.f32.gmra.mxu0 %v612
  %v679 = vpop.f32.mrf.mxu0
  %v680 = vadd.f32 0.0, %v679
  %681 = vmatmul.f32.gmra.mxu0 %v615
  %v682 = vpop.f32.mrf.mxu0
  %v683 = vadd.f32 0.0, %v682
  %684 = vmatmul.f32.gmra.mxu0 %v618
  %v685 = vpop.f32.mrf.mxu0
  %v686 = vadd.f32 0.0, %v685
  %687 = vmatmul.f32.gmra.mxu0 %v621
  %v688 = vpop.f32.mrf.mxu0
  %v689 = vadd.f32 0.0, %v688
  %690 = vmatmul.f32.gmra.mxu0 %v624
  %v691 = vpop.f32.mrf.mxu0
  %v692 = vadd.f32 0.0, %v691
  %693 = vmatmul.f32.gmra.mxu0 %v627
  %v694 = vpop.f32.mrf.mxu0
  %v695 = vadd.f32 0.0, %v694
  %696 = vmatmul.f32.gmra.mxu0 %v630
  %v697 = vpop.f32.mrf.mxu0
  %v698 = vadd.f32 0.0, %v697
  %699 = vdwg.mxu0
  %v700 = vadd.f32 %v550, %v653
  %v701 = vadd.f32 %v551, %v656
  %v702 = vadd.f32 %v552, %v659
  %v703 = vadd.f32 %v553, %v662
  %v704 = vadd.f32 %v554, %v665
  %v705 = vadd.f32 %v555, %v668
  %v706 = vadd.f32 %v556, %v671
  %v707 = vadd.f32 %v557, %v674
  %v708 = vadd.f32 %v558, %v677
  %v709 = vadd.f32 %v559, %v680
  %v710 = vadd.f32 %v560, %v683
  %v711 = vadd.f32 %v561, %v686
  %v712 = vadd.f32 %v562, %v689
  %v713 = vadd.f32 %v563, %v692
  %v714 = vadd.f32 %v564, %v695
  %v715 = vadd.f32 %v565, %v698
  %716 = vst [vmem:[%s10] sm:$0xff] %v700
  %717 = vst [vmem:[%s10 + $0x8] sm:$0xff] %v701
  %718 = vst [vmem:[%s10 + $0x10] sm:$0xff] %v702
  %719 = vst [vmem:[%s10 + $0x18] sm:$0xff] %v703
  %720 = vst [vmem:[%s10 + $0x20] sm:$0xff] %v704
  %721 = vst [vmem:[%s10 + $0x28] sm:$0xff] %v705
  %722 = vst [vmem:[%s10 + $0x30] sm:$0xff] %v706
  %723 = vst [vmem:[%s10 + $0x38] sm:$0xff] %v707
  %724 = vst [vmem:[%s10 + $0x40] sm:$0xff] %v708
  %725 = vst [vmem:[%s10 + $0x48] sm:$0xff] %v709
  %726 = vst [vmem:[%s10 + $0x50] sm:$0xff] %v710
  %727 = vst [vmem:[%s10 + $0x58] sm:$0xff] %v711
  %728 = vst [vmem:[%s10 + $0x60] sm:$0xff] %v712
  %729 = vst [vmem:[%s10 + $0x68] sm:$0xff] %v713
  %730 = vst [vmem:[%s10 + $0x70] sm:$0xff] %v714
  %731 = vst [vmem:[%s10 + $0x78] sm:$0xff] %v715
  %v732 = vld [vmem:[%s10] sm:$0xff]
  %v733 = vld [vmem:[%s10 + $0x8] sm:$0xff]
  %v734 = vld [vmem:[%s10 + $0x10] sm:$0xff]
  %v735 = vld [vmem:[%s10 + $0x18] sm:$0xff]
  %v736 = vld [vmem:[%s10 + $0x20] sm:$0xff]
  %v737 = vld [vmem:[%s10 + $0x28] sm:$0xff]
  %v738 = vld [vmem:[%s10 + $0x30] sm:$0xff]
  %v739 = vld [vmem:[%s10 + $0x38] sm:$0xff]
  %v740 = vld [vmem:[%s10 + $0x40] sm:$0xff]
  %v741 = vld [vmem:[%s10 + $0x48] sm:$0xff]
  %v742 = vld [vmem:[%s10 + $0x50] sm:$0xff]
  %v743 = vld [vmem:[%s10 + $0x58] sm:$0xff]
  %v744 = vld [vmem:[%s10 + $0x60] sm:$0xff]
  %v745 = vld [vmem:[%s10 + $0x68] sm:$0xff]
  %v746 = vld [vmem:[%s10 + $0x70] sm:$0xff]
  %v747 = vld [vmem:[%s10 + $0x78] sm:$0xff]
  %v748 = vld [vmem:[%s4] sm:$0xff]
  %v749 = vld [vmem:[%s4 + $0x8] sm:$0xff]
  %v750 = vld [vmem:[%s4 + $0x10] sm:$0xff]
  %v751 = vld [vmem:[%s4 + $0x18] sm:$0xff]
  %v752 = vld [vmem:[%s4 + $0x20] sm:$0xff]
  %v753 = vld [vmem:[%s4 + $0x28] sm:$0xff]
  %v754 = vld [vmem:[%s4 + $0x30] sm:$0xff]
  %v755 = vld [vmem:[%s4 + $0x38] sm:$0xff]
  %v756 = vld [vmem:[%s4 + $0x40] sm:$0xff]
  %v757 = vld [vmem:[%s4 + $0x48] sm:$0xff]
  %v758 = vld [vmem:[%s4 + $0x50] sm:$0xff]
  %v759 = vld [vmem:[%s4 + $0x58] sm:$0xff]
  %v760 = vld [vmem:[%s4 + $0x60] sm:$0xff]
  %v761 = vld [vmem:[%s4 + $0x68] sm:$0xff]
  %v762 = vld [vmem:[%s4 + $0x70] sm:$0xff]
  %v763 = vld [vmem:[%s4 + $0x78] sm:$0xff]
  %s764 = scalar_lea.vmem %s9, 16
  %v765 = vld [vmem:[%s764] sm:$0xf]
  %v767 = vsel %vm52, %v748, 0
  %v770 = vsel %vm52, %v749, 0
  %v773 = vsel %vm52, %v750, 0
  %v776 = vsel %vm52, %v751, 0
  %v779 = vsel %vm52, %v752, 0
  %v782 = vsel %vm52, %v753, 0
  %v785 = vsel %vm52, %v754, 0
  %v788 = vsel %vm52, %v755, 0
  %v791 = vsel %vm52, %v756, 0
  %v794 = vsel %vm52, %v757, 0
  %v797 = vsel %vm52, %v758, 0
  %v800 = vsel %vm52, %v759, 0
  %v803 = vsel %vm52, %v760, 0
  %v806 = vsel %vm52, %v761, 0
  %v809 = vsel %vm52, %v762, 0
  %v812 = vsel %vm52, %v763, 0
  %v815 = vsel %vm101, %v765, 0
  %817 = vmatpush.msra.mxu0 0.0
  %818 = vmatpush.msra.mxu0 0.0
  %819 = vmatpush.msra.mxu0 0.0
  %820 = vmatpush.msra.mxu0 0.0
  %821 = vmatpush.msra.mxu0 0.0
  %822 = vmatpush.msra.mxu0 0.0
  %823 = vmatpush.msra.mxu0 0.0
  %824 = vmatpush.msra.mxu0 0.0
  %825 = vmatpush.msra.mxu0 0.0
  %826 = vmatpush.msra.mxu0 0.0
  %827 = vmatpush.msra.mxu0 0.0
  %828 = vmatpush.msra.mxu0 0.0
  %829 = vmatpush.msra.mxu0 0.0
  %830 = vmatpush.msra.mxu0 0.0
  %831 = vmatpush.msra.mxu0 0.0
  %832 = vmatpush.msra.mxu0 %v815
  %833 = vmatmul.f32.gmra.mxu0 %v767
  %v834 = vpop.f32.mrf.mxu0
  %v835 = vadd.f32 0.0, %v834
  %836 = vmatmul.f32.gmra.mxu0 %v770
  %v837 = vpop.f32.mrf.mxu0
  %v838 = vadd.f32 0.0, %v837
  %839 = vmatmul.f32.gmra.mxu0 %v773
  %v840 = vpop.f32.mrf.mxu0
  %v841 = vadd.f32 0.0, %v840
  %842 = vmatmul.f32.gmra.mxu0 %v776
  %v843 = vpop.f32.mrf.mxu0
  %v844 = vadd.f32 0.0, %v843
  %845 = vmatmul.f32.gmra.mxu0 %v779
  %v846 = vpop.f32.mrf.mxu0
  %v847 = vadd.f32 0.0, %v846
  %848 = vmatmul.f32.gmra.mxu0 %v782
  %v849 = vpop.f32.mrf.mxu0
  %v850 = vadd.f32 0.0, %v849
  %851 = vmatmul.f32.gmra.mxu0 %v785
  %v852 = vpop.f32.mrf.mxu0
  %v853 = vadd.f32 0.0, %v852
  %854 = vmatmul.f32.gmra.mxu0 %v788
  %v855 = vpop.f32.mrf.mxu0
  %v856 = vadd.f32 0.0, %v855
  %857 = vmatmul.f32.gmra.mxu0 %v791
  %v858 = vpop.f32.mrf.mxu0
  %v859 = vadd.f32 0.0, %v858
  %860 = vmatmul.f32.gmra.mxu0 %v794
  %v861 = vpop.f32.mrf.mxu0
  %v862 = vadd.f32 0.0, %v861
  %863 = vmatmul.f32.gmra.mxu0 %v797
  %v864 = vpop.f32.mrf.mxu0
  %v865 = vadd.f32 0.0, %v864
  %866 = vmatmul.f32.gmra.mxu0 %v800
  %v867 = vpop.f32.mrf.mxu0
  %v868 = vadd.f32 0.0, %v867
  %869 = vmatmul.f32.gmra.mxu0 %v803
  %v870 = vpop.f32.mrf.mxu0
  %v871 = vadd.f32 0.0, %v870
  %872 = vmatmul.f32.gmra.mxu0 %v806
  %v873 = vpop.f32.mrf.mxu0
  %v874 = vadd.f32 0.0, %v873
  %875 = vmatmul.f32.gmra.mxu0 %v809
  %v876 = vpop.f32.mrf.mxu0
  %v877 = vadd.f32 0.0, %v876
  %878 = vmatmul.f32.gmra.mxu0 %v812
  %v879 = vpop.f32.mrf.mxu0
  %v880 = vadd.f32 0.0, %v879
  %881 = vdwg.mxu0
  %v882 = vadd.f32 %v732, %v835
  %v883 = vadd.f32 %v733, %v838
  %v884 = vadd.f32 %v734, %v841
  %v885 = vadd.f32 %v735, %v844
  %v886 = vadd.f32 %v736, %v847
  %v887 = vadd.f32 %v737, %v850
  %v888 = vadd.f32 %v738, %v853
  %v889 = vadd.f32 %v739, %v856
  %v890 = vadd.f32 %v740, %v859
  %v891 = vadd.f32 %v741, %v862
  %v892 = vadd.f32 %v742, %v865
  %v893 = vadd.f32 %v743, %v868
  %v894 = vadd.f32 %v744, %v871
  %v895 = vadd.f32 %v745, %v874
  %v896 = vadd.f32 %v746, %v877
  %v897 = vadd.f32 %v747, %v880
  %898 = vst [vmem:[%s10] sm:$0xff] %v882
  %899 = vst [vmem:[%s10 + $0x8] sm:$0xff] %v883
  %900 = vst [vmem:[%s10 + $0x10] sm:$0xff] %v884
  %901 = vst [vmem:[%s10 + $0x18] sm:$0xff] %v885
  %902 = vst [vmem:[%s10 + $0x20] sm:$0xff] %v886
  %903 = vst [vmem:[%s10 + $0x28] sm:$0xff] %v887
  %904 = vst [vmem:[%s10 + $0x30] sm:$0xff] %v888
  %905 = vst [vmem:[%s10 + $0x38] sm:$0xff] %v889
  %906 = vst [vmem:[%s10 + $0x40] sm:$0xff] %v890
  %907 = vst [vmem:[%s10 + $0x48] sm:$0xff] %v891
  %908 = vst [vmem:[%s10 + $0x50] sm:$0xff] %v892
  %909 = vst [vmem:[%s10 + $0x58] sm:$0xff] %v893
  %910 = vst [vmem:[%s10 + $0x60] sm:$0xff] %v894
  %911 = vst [vmem:[%s10 + $0x68] sm:$0xff] %v895
  %912 = vst [vmem:[%s10 + $0x70] sm:$0xff] %v896
  %913 = vst [vmem:[%s10 + $0x78] sm:$0xff] %v897
  %v914 = vld [vmem:[%s10] sm:$0xff]
  %v915 = vld [vmem:[%s10 + $0x8] sm:$0xff]
  %v916 = vld [vmem:[%s10 + $0x10] sm:$0xff]
  %v917 = vld [vmem:[%s10 + $0x18] sm:$0xff]
  %v918 = vld [vmem:[%s10 + $0x20] sm:$0xff]
  %v919 = vld [vmem:[%s10 + $0x28] sm:$0xff]
  %v920 = vld [vmem:[%s10 + $0x30] sm:$0xff]
  %v921 = vld [vmem:[%s10 + $0x38] sm:$0xff]
  %v922 = vld [vmem:[%s10 + $0x40] sm:$0xff]
  %v923 = vld [vmem:[%s10 + $0x48] sm:$0xff]
  %v924 = vld [vmem:[%s10 + $0x50] sm:$0xff]
  %v925 = vld [vmem:[%s10 + $0x58] sm:$0xff]
  %v926 = vld [vmem:[%s10 + $0x60] sm:$0xff]
  %v927 = vld [vmem:[%s10 + $0x68] sm:$0xff]
  %v928 = vld [vmem:[%s10 + $0x70] sm:$0xff]
  %v929 = vld [vmem:[%s10 + $0x78] sm:$0xff]
  %v930 = vld [vmem:[%s5] sm:$0xff]
  %v931 = vld [vmem:[%s5 + $0x8] sm:$0xff]
  %v932 = vld [vmem:[%s5 + $0x10] sm:$0xff]
  %v933 = vld [vmem:[%s5 + $0x18] sm:$0xff]
  %v934 = vld [vmem:[%s5 + $0x20] sm:$0xff]
  %v935 = vld [vmem:[%s5 + $0x28] sm:$0xff]
  %v936 = vld [vmem:[%s5 + $0x30] sm:$0xff]
  %v937 = vld [vmem:[%s5 + $0x38] sm:$0xff]
  %v938 = vld [vmem:[%s5 + $0x40] sm:$0xff]
  %v939 = vld [vmem:[%s5 + $0x48] sm:$0xff]
  %v940 = vld [vmem:[%s5 + $0x50] sm:$0xff]
  %v941 = vld [vmem:[%s5 + $0x58] sm:$0xff]
  %v942 = vld [vmem:[%s5 + $0x60] sm:$0xff]
  %v943 = vld [vmem:[%s5 + $0x68] sm:$0xff]
  %v944 = vld [vmem:[%s5 + $0x70] sm:$0xff]
  %v945 = vld [vmem:[%s5 + $0x78] sm:$0xff]
  %s946 = scalar_lea.vmem %s9, 20
  %v947 = vld [vmem:[%s946] sm:$0xf]
  %v949 = vsel %vm52, %v930, 0
  %v952 = vsel %vm52, %v931, 0
  %v955 = vsel %vm52, %v932, 0
  %v958 = vsel %vm52, %v933, 0
  %v961 = vsel %vm52, %v934, 0
  %v964 = vsel %vm52, %v935, 0
  %v967 = vsel %vm52, %v936, 0
  %v970 = vsel %vm52, %v937, 0
  %v973 = vsel %vm52, %v938, 0
  %v976 = vsel %vm52, %v939, 0
  %v979 = vsel %vm52, %v940, 0
  %v982 = vsel %vm52, %v941, 0
  %v985 = vsel %vm52, %v942, 0
  %v988 = vsel %vm52, %v943, 0
  %v991 = vsel %vm52, %v944, 0
  %v994 = vsel %vm52, %v945, 0
  %v997 = vsel %vm101, %v947, 0
  %999 = vmatpush.msra.mxu0 0.0
  %1000 = vmatpush.msra.mxu0 0.0
  %1001 = vmatpush.msra.mxu0 0.0
  %1002 = vmatpush.msra.mxu0 0.0
  %1003 = vmatpush.msra.mxu0 0.0
  %1004 = vmatpush.msra.mxu0 0.0
  %1005 = vmatpush.msra.mxu0 0.0
  %1006 = vmatpush.msra.mxu0 0.0
  %1007 = vmatpush.msra.mxu0 0.0
  %1008 = vmatpush.msra.mxu0 0.0
  %1009 = vmatpush.msra.mxu0 0.0
  %1010 = vmatpush.msra.mxu0 0.0
  %1011 = vmatpush.msra.mxu0 0.0
  %1012 = vmatpush.msra.mxu0 0.0
  %1013 = vmatpush.msra.mxu0 0.0
  %1014 = vmatpush.msra.mxu0 %v997
  %1015 = vmatmul.f32.gmra.mxu0 %v949
  %v1016 = vpop.f32.mrf.mxu0
  %v1017 = vadd.f32 0.0, %v1016
  %1018 = vmatmul.f32.gmra.mxu0 %v952
  %v1019 = vpop.f32.mrf.mxu0
  %v1020 = vadd.f32 0.0, %v1019
  %1021 = vmatmul.f32.gmra.mxu0 %v955
  %v1022 = vpop.f32.mrf.mxu0
  %v1023 = vadd.f32 0.0, %v1022
  %1024 = vmatmul.f32.gmra.mxu0 %v958
  %v1025 = vpop.f32.mrf.mxu0
  %v1026 = vadd.f32 0.0, %v1025
  %1027 = vmatmul.f32.gmra.mxu0 %v961
  %v1028 = vpop.f32.mrf.mxu0
  %v1029 = vadd.f32 0.0, %v1028
  %1030 = vmatmul.f32.gmra.mxu0 %v964
  %v1031 = vpop.f32.mrf.mxu0
  %v1032 = vadd.f32 0.0, %v1031
  %1033 = vmatmul.f32.gmra.mxu0 %v967
  %v1034 = vpop.f32.mrf.mxu0
  %v1035 = vadd.f32 0.0, %v1034
  %1036 = vmatmul.f32.gmra.mxu0 %v970
  %v1037 = vpop.f32.mrf.mxu0
  %v1038 = vadd.f32 0.0, %v1037
  %1039 = vmatmul.f32.gmra.mxu0 %v973
  %v1040 = vpop.f32.mrf.mxu0
  %v1041 = vadd.f32 0.0, %v1040
  %1042 = vmatmul.f32.gmra.mxu0 %v976
  %v1043 = vpop.f32.mrf.mxu0
  %v1044 = vadd.f32 0.0, %v1043
  %1045 = vmatmul.f32.gmra.mxu0 %v979
  %v1046 = vpop.f32.mrf.mxu0
  %v1047 = vadd.f32 0.0, %v1046
  %1048 = vmatmul.f32.gmra.mxu0 %v982
  %v1049 = vpop.f32.mrf.mxu0
  %v1050 = vadd.f32 0.0, %v1049
  %1051 = vmatmul.f32.gmra.mxu0 %v985
  %v1052 = vpop.f32.mrf.mxu0
  %v1053 = vadd.f32 0.0, %v1052
  %1054 = vmatmul.f32.gmra.mxu0 %v988
  %v1055 = vpop.f32.mrf.mxu0
  %v1056 = vadd.f32 0.0, %v1055
  %1057 = vmatmul.f32.gmra.mxu0 %v991
  %v1058 = vpop.f32.mrf.mxu0
  %v1059 = vadd.f32 0.0, %v1058
  %1060 = vmatmul.f32.gmra.mxu0 %v994
  %v1061 = vpop.f32.mrf.mxu0
  %v1062 = vadd.f32 0.0, %v1061
  %1063 = vdwg.mxu0
  %v1064 = vadd.f32 %v914, %v1017
  %v1065 = vadd.f32 %v915, %v1020
  %v1066 = vadd.f32 %v916, %v1023
  %v1067 = vadd.f32 %v917, %v1026
  %v1068 = vadd.f32 %v918, %v1029
  %v1069 = vadd.f32 %v919, %v1032
  %v1070 = vadd.f32 %v920, %v1035
  %v1071 = vadd.f32 %v921, %v1038
  %v1072 = vadd.f32 %v922, %v1041
  %v1073 = vadd.f32 %v923, %v1044
  %v1074 = vadd.f32 %v924, %v1047
  %v1075 = vadd.f32 %v925, %v1050
  %v1076 = vadd.f32 %v926, %v1053
  %v1077 = vadd.f32 %v927, %v1056
  %v1078 = vadd.f32 %v928, %v1059
  %v1079 = vadd.f32 %v929, %v1062
  %1080 = vst [vmem:[%s10] sm:$0xff] %v1064
  %1081 = vst [vmem:[%s10 + $0x8] sm:$0xff] %v1065
  %1082 = vst [vmem:[%s10 + $0x10] sm:$0xff] %v1066
  %1083 = vst [vmem:[%s10 + $0x18] sm:$0xff] %v1067
  %1084 = vst [vmem:[%s10 + $0x20] sm:$0xff] %v1068
  %1085 = vst [vmem:[%s10 + $0x28] sm:$0xff] %v1069
  %1086 = vst [vmem:[%s10 + $0x30] sm:$0xff] %v1070
  %1087 = vst [vmem:[%s10 + $0x38] sm:$0xff] %v1071
  %1088 = vst [vmem:[%s10 + $0x40] sm:$0xff] %v1072
  %1089 = vst [vmem:[%s10 + $0x48] sm:$0xff] %v1073
  %1090 = vst [vmem:[%s10 + $0x50] sm:$0xff] %v1074
  %1091 = vst [vmem:[%s10 + $0x58] sm:$0xff] %v1075
  %1092 = vst [vmem:[%s10 + $0x60] sm:$0xff] %v1076
  %1093 = vst [vmem:[%s10 + $0x68] sm:$0xff] %v1077
  %1094 = vst [vmem:[%s10 + $0x70] sm:$0xff] %v1078
  %1095 = vst [vmem:[%s10 + $0x78] sm:$0xff] %v1079
  %v1096 = vld [vmem:[%s10] sm:$0xff]
  %v1097 = vld [vmem:[%s10 + $0x8] sm:$0xff]
  %v1098 = vld [vmem:[%s10 + $0x10] sm:$0xff]
  %v1099 = vld [vmem:[%s10 + $0x18] sm:$0xff]
  %v1100 = vld [vmem:[%s10 + $0x20] sm:$0xff]
  %v1101 = vld [vmem:[%s10 + $0x28] sm:$0xff]
  %v1102 = vld [vmem:[%s10 + $0x30] sm:$0xff]
  %v1103 = vld [vmem:[%s10 + $0x38] sm:$0xff]
  %v1104 = vld [vmem:[%s10 + $0x40] sm:$0xff]
  %v1105 = vld [vmem:[%s10 + $0x48] sm:$0xff]
  %v1106 = vld [vmem:[%s10 + $0x50] sm:$0xff]
  %v1107 = vld [vmem:[%s10 + $0x58] sm:$0xff]
  %v1108 = vld [vmem:[%s10 + $0x60] sm:$0xff]
  %v1109 = vld [vmem:[%s10 + $0x68] sm:$0xff]
  %v1110 = vld [vmem:[%s10 + $0x70] sm:$0xff]
  %v1111 = vld [vmem:[%s10 + $0x78] sm:$0xff]
  %v1112 = vld [vmem:[%s6] sm:$0xff]
  %v1113 = vld [vmem:[%s6 + $0x8] sm:$0xff]
  %v1114 = vld [vmem:[%s6 + $0x10] sm:$0xff]
  %v1115 = vld [vmem:[%s6 + $0x18] sm:$0xff]
  %v1116 = vld [vmem:[%s6 + $0x20] sm:$0xff]
  %v1117 = vld [vmem:[%s6 + $0x28] sm:$0xff]
  %v1118 = vld [vmem:[%s6 + $0x30] sm:$0xff]
  %v1119 = vld [vmem:[%s6 + $0x38] sm:$0xff]
  %v1120 = vld [vmem:[%s6 + $0x40] sm:$0xff]
  %v1121 = vld [vmem:[%s6 + $0x48] sm:$0xff]
  %v1122 = vld [vmem:[%s6 + $0x50] sm:$0xff]
  %v1123 = vld [vmem:[%s6 + $0x58] sm:$0xff]
  %v1124 = vld [vmem:[%s6 + $0x60] sm:$0xff]
  %v1125 = vld [vmem:[%s6 + $0x68] sm:$0xff]
  %v1126 = vld [vmem:[%s6 + $0x70] sm:$0xff]
  %v1127 = vld [vmem:[%s6 + $0x78] sm:$0xff]
  %s1128 = scalar_lea.vmem %s9, 24
  %v1129 = vld [vmem:[%s1128] sm:$0xf]
  %v1131 = vsel %vm52, %v1112, 0
  %v1134 = vsel %vm52, %v1113, 0
  %v1137 = vsel %vm52, %v1114, 0
  %v1140 = vsel %vm52, %v1115, 0
  %v1143 = vsel %vm52, %v1116, 0
  %v1146 = vsel %vm52, %v1117, 0
  %v1149 = vsel %vm52, %v1118, 0
  %v1152 = vsel %vm52, %v1119, 0
  %v1155 = vsel %vm52, %v1120, 0
  %v1158 = vsel %vm52, %v1121, 0
  %v1161 = vsel %vm52, %v1122, 0
  %v1164 = vsel %vm52, %v1123, 0
  %v1167 = vsel %vm52, %v1124, 0
  %v1170 = vsel %vm52, %v1125, 0
  %v1173 = vsel %vm52, %v1126, 0
  %v1176 = vsel %vm52, %v1127, 0
  %v1179 = vsel %vm101, %v1129, 0
  %1181 = vmatpush.msra.mxu0 0.0
  %1182 = vmatpush.msra.mxu0 0.0
  %1183 = vmatpush.msra.mxu0 0.0
  %1184 = vmatpush.msra.mxu0 0.0
  %1185 = vmatpush.msra.mxu0 0.0
  %1186 = vmatpush.msra.mxu0 0.0
  %1187 = vmatpush.msra.mxu0 0.0
  %1188 = vmatpush.msra.mxu0 0.0
  %1189 = vmatpush.msra.mxu0 0.0
  %1190 = vmatpush.msra.mxu0 0.0
  %1191 = vmatpush.msra.mxu0 0.0
  %1192 = vmatpush.msra.mxu0 0.0
  %1193 = vmatpush.msra.mxu0 0.0
  %1194 = vmatpush.msra.mxu0 0.0
  %1195 = vmatpush.msra.mxu0 0.0
  %1196 = vmatpush.msra.mxu0 %v1179
  %1197 = vmatmul.f32.gmra.mxu0 %v1131
  %v1198 = vpop.f32.mrf.mxu0
  %v1199 = vadd.f32 0.0, %v1198
  %1200 = vmatmul.f32.gmra.mxu0 %v1134
  %v1201 = vpop.f32.mrf.mxu0
  %v1202 = vadd.f32 0.0, %v1201
  %1203 = vmatmul.f32.gmra.mxu0 %v1137
  %v1204 = vpop.f32.mrf.mxu0
  %v1205 = vadd.f32 0.0, %v1204
  %1206 = vmatmul.f32.gmra.mxu0 %v1140
  %v1207 = vpop.f32.mrf.mxu0
  %v1208 = vadd.f32 0.0, %v1207
  %1209 = vmatmul.f32.gmra.mxu0 %v1143
  %v1210 = vpop.f32.mrf.mxu0
  %v1211 = vadd.f32 0.0, %v1210
  %1212 = vmatmul.f32.gmra.mxu0 %v1146
  %v1213 = vpop.f32.mrf.mxu0
  %v1214 = vadd.f32 0.0, %v1213
  %1215 = vmatmul.f32.gmra.mxu0 %v1149
  %v1216 = vpop.f32.mrf.mxu0
  %v1217 = vadd.f32 0.0, %v1216
  %1218 = vmatmul.f32.gmra.mxu0 %v1152
  %v1219 = vpop.f32.mrf.mxu0
  %v1220 = vadd.f32 0.0, %v1219
  %1221 = vmatmul.f32.gmra.mxu0 %v1155
  %v1222 = vpop.f32.mrf.mxu0
  %v1223 = vadd.f32 0.0, %v1222
  %1224 = vmatmul.f32.gmra.mxu0 %v1158
  %v1225 = vpop.f32.mrf.mxu0
  %v1226 = vadd.f32 0.0, %v1225
  %1227 = vmatmul.f32.gmra.mxu0 %v1161
  %v1228 = vpop.f32.mrf.mxu0
  %v1229 = vadd.f32 0.0, %v1228
  %1230 = vmatmul.f32.gmra.mxu0 %v1164
  %v1231 = vpop.f32.mrf.mxu0
  %v1232 = vadd.f32 0.0, %v1231
  %1233 = vmatmul.f32.gmra.mxu0 %v1167
  %v1234 = vpop.f32.mrf.mxu0
  %v1235 = vadd.f32 0.0, %v1234
  %1236 = vmatmul.f32.gmra.mxu0 %v1170
  %v1237 = vpop.f32.mrf.mxu0
  %v1238 = vadd.f32 0.0, %v1237
  %1239 = vmatmul.f32.gmra.mxu0 %v1173
  %v1240 = vpop.f32.mrf.mxu0
  %v1241 = vadd.f32 0.0, %v1240
  %1242 = vmatmul.f32.gmra.mxu0 %v1176
  %v1243 = vpop.f32.mrf.mxu0
  %v1244 = vadd.f32 0.0, %v1243
  %1245 = vdwg.mxu0
  %v1246 = vadd.f32 %v1096, %v1199
  %v1247 = vadd.f32 %v1097, %v1202
  %v1248 = vadd.f32 %v1098, %v1205
  %v1249 = vadd.f32 %v1099, %v1208
  %v1250 = vadd.f32 %v1100, %v1211
  %v1251 = vadd.f32 %v1101, %v1214
  %v1252 = vadd.f32 %v1102, %v1217
  %v1253 = vadd.f32 %v1103, %v1220
  %v1254 = vadd.f32 %v1104, %v1223
  %v1255 = vadd.f32 %v1105, %v1226
  %v1256 = vadd.f32 %v1106, %v1229
  %v1257 = vadd.f32 %v1107, %v1232
  %v1258 = vadd.f32 %v1108, %v1235
  %v1259 = vadd.f32 %v1109, %v1238
  %v1260 = vadd.f32 %v1110, %v1241
  %v1261 = vadd.f32 %v1111, %v1244
  %1262 = vst [vmem:[%s10] sm:$0xff] %v1246
  %1263 = vst [vmem:[%s10 + $0x8] sm:$0xff] %v1247
  %1264 = vst [vmem:[%s10 + $0x10] sm:$0xff] %v1248
  %1265 = vst [vmem:[%s10 + $0x18] sm:$0xff] %v1249
  %1266 = vst [vmem:[%s10 + $0x20] sm:$0xff] %v1250
  %1267 = vst [vmem:[%s10 + $0x28] sm:$0xff] %v1251
  %1268 = vst [vmem:[%s10 + $0x30] sm:$0xff] %v1252
  %1269 = vst [vmem:[%s10 + $0x38] sm:$0xff] %v1253
  %1270 = vst [vmem:[%s10 + $0x40] sm:$0xff] %v1254
  %1271 = vst [vmem:[%s10 + $0x48] sm:$0xff] %v1255
  %1272 = vst [vmem:[%s10 + $0x50] sm:$0xff] %v1256
  %1273 = vst [vmem:[%s10 + $0x58] sm:$0xff] %v1257
  %1274 = vst [vmem:[%s10 + $0x60] sm:$0xff] %v1258
  %1275 = vst [vmem:[%s10 + $0x68] sm:$0xff] %v1259
  %1276 = vst [vmem:[%s10 + $0x70] sm:$0xff] %v1260
  %1277 = vst [vmem:[%s10 + $0x78] sm:$0xff] %v1261
  %v1278 = vld [vmem:[%s10] sm:$0xff]
  %v1279 = vld [vmem:[%s10 + $0x8] sm:$0xff]
  %v1280 = vld [vmem:[%s10 + $0x10] sm:$0xff]
  %v1281 = vld [vmem:[%s10 + $0x18] sm:$0xff]
  %v1282 = vld [vmem:[%s10 + $0x20] sm:$0xff]
  %v1283 = vld [vmem:[%s10 + $0x28] sm:$0xff]
  %v1284 = vld [vmem:[%s10 + $0x30] sm:$0xff]
  %v1285 = vld [vmem:[%s10 + $0x38] sm:$0xff]
  %v1286 = vld [vmem:[%s10 + $0x40] sm:$0xff]
  %v1287 = vld [vmem:[%s10 + $0x48] sm:$0xff]
  %v1288 = vld [vmem:[%s10 + $0x50] sm:$0xff]
  %v1289 = vld [vmem:[%s10 + $0x58] sm:$0xff]
  %v1290 = vld [vmem:[%s10 + $0x60] sm:$0xff]
  %v1291 = vld [vmem:[%s10 + $0x68] sm:$0xff]
  %v1292 = vld [vmem:[%s10 + $0x70] sm:$0xff]
  %v1293 = vld [vmem:[%s10 + $0x78] sm:$0xff]
  %v1294 = vld [vmem:[%s7] sm:$0xff]
  %v1295 = vld [vmem:[%s7 + $0x8] sm:$0xff]
  %v1296 = vld [vmem:[%s7 + $0x10] sm:$0xff]
  %v1297 = vld [vmem:[%s7 + $0x18] sm:$0xff]
  %v1298 = vld [vmem:[%s7 + $0x20] sm:$0xff]
  %v1299 = vld [vmem:[%s7 + $0x28] sm:$0xff]
  %v1300 = vld [vmem:[%s7 + $0x30] sm:$0xff]
  %v1301 = vld [vmem:[%s7 + $0x38] sm:$0xff]
  %v1302 = vld [vmem:[%s7 + $0x40] sm:$0xff]
  %v1303 = vld [vmem:[%s7 + $0x48] sm:$0xff]
  %v1304 = vld [vmem:[%s7 + $0x50] sm:$0xff]
  %v1305 = vld [vmem:[%s7 + $0x58] sm:$0xff]
  %v1306 = vld [vmem:[%s7 + $0x60] sm:$0xff]
  %v1307 = vld [vmem:[%s7 + $0x68] sm:$0xff]
  %v1308 = vld [vmem:[%s7 + $0x70] sm:$0xff]
  %v1309 = vld [vmem:[%s7 + $0x78] sm:$0xff]
  %s1310 = scalar_lea.vmem %s9, 28
  %v1311 = vld [vmem:[%s1310] sm:$0xf]
  %v1313 = vsel %vm52, %v1294, 0
  %v1316 = vsel %vm52, %v1295, 0
  %v1319 = vsel %vm52, %v1296, 0
  %v1322 = vsel %vm52, %v1297, 0
  %v1325 = vsel %vm52, %v1298, 0
  %v1328 = vsel %vm52, %v1299, 0
  %v1331 = vsel %vm52, %v1300, 0
  %v1334 = vsel %vm52, %v1301, 0
  %v1337 = vsel %vm52, %v1302, 0
  %v1340 = vsel %vm52, %v1303, 0
  %v1343 = vsel %vm52, %v1304, 0
  %v1346 = vsel %vm52, %v1305, 0
  %v1349 = vsel %vm52, %v1306, 0
  %v1352 = vsel %vm52, %v1307, 0
  %v1355 = vsel %vm52, %v1308, 0
  %v1358 = vsel %vm52, %v1309, 0
  %v1361 = vsel %vm101, %v1311, 0
  %1363 = vmatpush.msra.mxu0 0.0
  %1364 = vmatpush.msra.mxu0 0.0
  %1365 = vmatpush.msra.mxu0 0.0
  %1366 = vmatpush.msra.mxu0 0.0
  %1367 = vmatpush.msra.mxu0 0.0
  %1368 = vmatpush.msra.mxu0 0.0
  %1369 = vmatpush.msra.mxu0 0.0
  %1370 = vmatpush.msra.mxu0 0.0
  %1371 = vmatpush.msra.mxu0 0.0
  %1372 = vmatpush.msra.mxu0 0.0
  %1373 = vmatpush.msra.mxu0 0.0
  %1374 = vmatpush.msra.mxu0 0.0
  %1375 = vmatpush.msra.mxu0 0.0
  %1376 = vmatpush.msra.mxu0 0.0
  %1377 = vmatpush.msra.mxu0 0.0
  %1378 = vmatpush.msra.mxu0 %v1361
  %1379 = vmatmul.f32.gmra.mxu0 %v1313
  %v1380 = vpop.f32.mrf.mxu0
  %v1381 = vadd.f32 0.0, %v1380
  %1382 = vmatmul.f32.gmra.mxu0 %v1316
  %v1383 = vpop.f32.mrf.mxu0
  %v1384 = vadd.f32 0.0, %v1383
  %1385 = vmatmul.f32.gmra.mxu0 %v1319
  %v1386 = vpop.f32.mrf.mxu0
  %v1387 = vadd.f32 0.0, %v1386
  %1388 = vmatmul.f32.gmra.mxu0 %v1322
  %v1389 = vpop.f32.mrf.mxu0
  %v1390 = vadd.f32 0.0, %v1389
  %1391 = vmatmul.f32.gmra.mxu0 %v1325
  %v1392 = vpop.f32.mrf.mxu0
  %v1393 = vadd.f32 0.0, %v1392
  %1394 = vmatmul.f32.gmra.mxu0 %v1328
  %v1395 = vpop.f32.mrf.mxu0
  %v1396 = vadd.f32 0.0, %v1395
  %1397 = vmatmul.f32.gmra.mxu0 %v1331
  %v1398 = vpop.f32.mrf.mxu0
  %v1399 = vadd.f32 0.0, %v1398
  %1400 = vmatmul.f32.gmra.mxu0 %v1334
  %v1401 = vpop.f32.mrf.mxu0
  %v1402 = vadd.f32 0.0, %v1401
  %1403 = vmatmul.f32.gmra.mxu0 %v1337
  %v1404 = vpop.f32.mrf.mxu0
  %v1405 = vadd.f32 0.0, %v1404
  %1406 = vmatmul.f32.gmra.mxu0 %v1340
  %v1407 = vpop.f32.mrf.mxu0
  %v1408 = vadd.f32 0.0, %v1407
  %1409 = vmatmul.f32.gmra.mxu0 %v1343
  %v1410 = vpop.f32.mrf.mxu0
  %v1411 = vadd.f32 0.0, %v1410
  %1412 = vmatmul.f32.gmra.mxu0 %v1346
  %v1413 = vpop.f32.mrf.mxu0
  %v1414 = vadd.f32 0.0, %v1413
  %1415 = vmatmul.f32.gmra.mxu0 %v1349
  %v1416 = vpop.f32.mrf.mxu0
  %v1417 = vadd.f32 0.0, %v1416
  %1418 = vmatmul.f32.gmra.mxu0 %v1352
  %v1419 = vpop.f32.mrf.mxu0
  %v1420 = vadd.f32 0.0, %v1419
  %1421 = vmatmul.f32.gmra.mxu0 %v1355
  %v1422 = vpop.f32.mrf.mxu0
  %v1423 = vadd.f32 0.0, %v1422
  %1424 = vmatmul.f32.gmra.mxu0 %v1358
  %v1425 = vpop.f32.mrf.mxu0
  %v1426 = vadd.f32 0.0, %v1425
  %1427 = vdwg.mxu0
  %v1428 = vadd.f32 %v1278, %v1381
  %v1429 = vadd.f32 %v1279, %v1384
  %v1430 = vadd.f32 %v1280, %v1387
  %v1431 = vadd.f32 %v1281, %v1390
  %v1432 = vadd.f32 %v1282, %v1393
  %v1433 = vadd.f32 %v1283, %v1396
  %v1434 = vadd.f32 %v1284, %v1399
  %v1435 = vadd.f32 %v1285, %v1402
  %v1436 = vadd.f32 %v1286, %v1405
  %v1437 = vadd.f32 %v1287, %v1408
  %v1438 = vadd.f32 %v1288, %v1411
  %v1439 = vadd.f32 %v1289, %v1414
  %v1440 = vadd.f32 %v1290, %v1417
  %v1441 = vadd.f32 %v1291, %v1420
  %v1442 = vadd.f32 %v1292, %v1423
  %v1443 = vadd.f32 %v1293, %v1426
  %1444 = vst [vmem:[%s10] sm:$0xff] %v1428
  %1445 = vst [vmem:[%s10 + $0x8] sm:$0xff] %v1429
  %1446 = vst [vmem:[%s10 + $0x10] sm:$0xff] %v1430
  %1447 = vst [vmem:[%s10 + $0x18] sm:$0xff] %v1431
  %1448 = vst [vmem:[%s10 + $0x20] sm:$0xff] %v1432
  %1449 = vst [vmem:[%s10 + $0x28] sm:$0xff] %v1433
  %1450 = vst [vmem:[%s10 + $0x30] sm:$0xff] %v1434
  %1451 = vst [vmem:[%s10 + $0x38] sm:$0xff] %v1435
  %1452 = vst [vmem:[%s10 + $0x40] sm:$0xff] %v1436
  %1453 = vst [vmem:[%s10 + $0x48] sm:$0xff] %v1437
  %1454 = vst [vmem:[%s10 + $0x50] sm:$0xff] %v1438
  %1455 = vst [vmem:[%s10 + $0x58] sm:$0xff] %v1439
  %1456 = vst [vmem:[%s10 + $0x60] sm:$0xff] %v1440
  %1457 = vst [vmem:[%s10 + $0x68] sm:$0xff] %v1441
  %1458 = vst [vmem:[%s10 + $0x70] sm:$0xff] %v1442
  %1459 = vst [vmem:[%s10 + $0x78] sm:$0xff] %v1443
  %v1460 = vld [vmem:[%s10] sm:$0xff]
  %v1461 = vld [vmem:[%s10 + $0x8] sm:$0xff]
  %v1462 = vld [vmem:[%s10 + $0x10] sm:$0xff]
  %v1463 = vld [vmem:[%s10 + $0x18] sm:$0xff]
  %v1464 = vld [vmem:[%s10 + $0x20] sm:$0xff]
  %v1465 = vld [vmem:[%s10 + $0x28] sm:$0xff]
  %v1466 = vld [vmem:[%s10 + $0x30] sm:$0xff]
  %v1467 = vld [vmem:[%s10 + $0x38] sm:$0xff]
  %v1468 = vld [vmem:[%s10 + $0x40] sm:$0xff]
  %v1469 = vld [vmem:[%s10 + $0x48] sm:$0xff]
  %v1470 = vld [vmem:[%s10 + $0x50] sm:$0xff]
  %v1471 = vld [vmem:[%s10 + $0x58] sm:$0xff]
  %v1472 = vld [vmem:[%s10 + $0x60] sm:$0xff]
  %v1473 = vld [vmem:[%s10 + $0x68] sm:$0xff]
  %v1474 = vld [vmem:[%s10 + $0x70] sm:$0xff]
  %v1475 = vld [vmem:[%s10 + $0x78] sm:$0xff]
  %v1476 = vld [vmem:[%s8] sm:$0xff]
  %v1477 = vld [vmem:[%s8 + $0x8] sm:$0xff]
  %v1478 = vld [vmem:[%s8 + $0x10] sm:$0xff]
  %v1479 = vld [vmem:[%s8 + $0x18] sm:$0xff]
  %v1480 = vld [vmem:[%s8 + $0x20] sm:$0xff]
  %v1481 = vld [vmem:[%s8 + $0x28] sm:$0xff]
  %v1482 = vld [vmem:[%s8 + $0x30] sm:$0xff]
  %v1483 = vld [vmem:[%s8 + $0x38] sm:$0xff]
  %v1484 = vld [vmem:[%s8 + $0x40] sm:$0xff]
  %v1485 = vld [vmem:[%s8 + $0x48] sm:$0xff]
  %v1486 = vld [vmem:[%s8 + $0x50] sm:$0xff]
  %v1487 = vld [vmem:[%s8 + $0x58] sm:$0xff]
  %v1488 = vld [vmem:[%s8 + $0x60] sm:$0xff]
  %v1489 = vld [vmem:[%s8 + $0x68] sm:$0xff]
  %v1490 = vld [vmem:[%s8 + $0x70] sm:$0xff]
  %v1491 = vld [vmem:[%s8 + $0x78] sm:$0xff]
  %s1492 = scalar_lea.vmem %s9, 32
  %v1493 = vld [vmem:[%s1492] sm:$0xf]
  %v1495 = vsel %vm52, %v1476, 0
  %v1498 = vsel %vm52, %v1477, 0
  %v1501 = vsel %vm52, %v1478, 0
  %v1504 = vsel %vm52, %v1479, 0
  %v1507 = vsel %vm52, %v1480, 0
  %v1510 = vsel %vm52, %v1481, 0
  %v1513 = vsel %vm52, %v1482, 0
  %v1516 = vsel %vm52, %v1483, 0
  %v1519 = vsel %vm52, %v1484, 0
  %v1522 = vsel %vm52, %v1485, 0
  %v1525 = vsel %vm52, %v1486, 0
  %v1528 = vsel %vm52, %v1487, 0
  %v1531 = vsel %vm52, %v1488, 0
  %v1534 = vsel %vm52, %v1489, 0
  %v1537 = vsel %vm52, %v1490, 0
  %v1540 = vsel %vm52, %v1491, 0
  %v1543 = vsel %vm101, %v1493, 0
  %1545 = vmatpush.msra.mxu0 0.0
  %1546 = vmatpush.msra.mxu0 0.0
  %1547 = vmatpush.msra.mxu0 0.0
  %1548 = vmatpush.msra.mxu0 0.0
  %1549 = vmatpush.msra.mxu0 0.0
  %1550 = vmatpush.msra.mxu0 0.0
  %1551 = vmatpush.msra.mxu0 0.0
  %1552 = vmatpush.msra.mxu0 0.0
  %1553 = vmatpush.msra.mxu0 0.0
  %1554 = vmatpush.msra.mxu0 0.0
  %1555 = vmatpush.msra.mxu0 0.0
  %1556 = vmatpush.msra.mxu0 0.0
  %1557 = vmatpush.msra.mxu0 0.0
  %1558 = vmatpush.msra.mxu0 0.0
  %1559 = vmatpush.msra.mxu0 0.0
  %1560 = vmatpush.msra.mxu0 %v1543
  %1561 = vmatmul.f32.gmra.mxu0 %v1495
  %v1562 = vpop.f32.mrf.mxu0
  %v1563 = vadd.f32 0.0, %v1562
  %1564 = vmatmul.f32.gmra.mxu0 %v1498
  %v1565 = vpop.f32.mrf.mxu0
  %v1566 = vadd.f32 0.0, %v1565
  %1567 = vmatmul.f32.gmra.mxu0 %v1501
  %v1568 = vpop.f32.mrf.mxu0
  %v1569 = vadd.f32 0.0, %v1568
  %1570 = vmatmul.f32.gmra.mxu0 %v1504
  %v1571 = vpop.f32.mrf.mxu0
  %v1572 = vadd.f32 0.0, %v1571
  %1573 = vmatmul.f32.gmra.mxu0 %v1507
  %v1574 = vpop.f32.mrf.mxu0
  %v1575 = vadd.f32 0.0, %v1574
  %1576 = vmatmul.f32.gmra.mxu0 %v1510
  %v1577 = vpop.f32.mrf.mxu0
  %v1578 = vadd.f32 0.0, %v1577
  %1579 = vmatmul.f32.gmra.mxu0 %v1513
  %v1580 = vpop.f32.mrf.mxu0
  %v1581 = vadd.f32 0.0, %v1580
  %1582 = vmatmul.f32.gmra.mxu0 %v1516
  %v1583 = vpop.f32.mrf.mxu0
  %v1584 = vadd.f32 0.0, %v1583
  %1585 = vmatmul.f32.gmra.mxu0 %v1519
  %v1586 = vpop.f32.mrf.mxu0
  %v1587 = vadd.f32 0.0, %v1586
  %1588 = vmatmul.f32.gmra.mxu0 %v1522
  %v1589 = vpop.f32.mrf.mxu0
  %v1590 = vadd.f32 0.0, %v1589
  %1591 = vmatmul.f32.gmra.mxu0 %v1525
  %v1592 = vpop.f32.mrf.mxu0
  %v1593 = vadd.f32 0.0, %v1592
  %1594 = vmatmul.f32.gmra.mxu0 %v1528
  %v1595 = vpop.f32.mrf.mxu0
  %v1596 = vadd.f32 0.0, %v1595
  %1597 = vmatmul.f32.gmra.mxu0 %v1531
  %v1598 = vpop.f32.mrf.mxu0
  %v1599 = vadd.f32 0.0, %v1598
  %1600 = vmatmul.f32.gmra.mxu0 %v1534
  %v1601 = vpop.f32.mrf.mxu0
  %v1602 = vadd.f32 0.0, %v1601
  %1603 = vmatmul.f32.gmra.mxu0 %v1537
  %v1604 = vpop.f32.mrf.mxu0
  %v1605 = vadd.f32 0.0, %v1604
  %1606 = vmatmul.f32.gmra.mxu0 %v1540
  %v1607 = vpop.f32.mrf.mxu0
  %v1608 = vadd.f32 0.0, %v1607
  %1609 = vdwg.mxu0
  %v1610 = vadd.f32 %v1460, %v1563
  %v1611 = vadd.f32 %v1461, %v1566
  %v1612 = vadd.f32 %v1462, %v1569
  %v1613 = vadd.f32 %v1463, %v1572
  %v1614 = vadd.f32 %v1464, %v1575
  %v1615 = vadd.f32 %v1465, %v1578
  %v1616 = vadd.f32 %v1466, %v1581
  %v1617 = vadd.f32 %v1467, %v1584
  %v1618 = vadd.f32 %v1468, %v1587
  %v1619 = vadd.f32 %v1469, %v1590
  %v1620 = vadd.f32 %v1470, %v1593
  %v1621 = vadd.f32 %v1471, %v1596
  %v1622 = vadd.f32 %v1472, %v1599
  %v1623 = vadd.f32 %v1473, %v1602
  %v1624 = vadd.f32 %v1474, %v1605
  %v1625 = vadd.f32 %v1475, %v1608
  %1626 = vst [vmem:[%s10] sm:$0xff] %v1610
  %1627 = vst [vmem:[%s10 + $0x8] sm:$0xff] %v1611
  %1628 = vst [vmem:[%s10 + $0x10] sm:$0xff] %v1612
  %1629 = vst [vmem:[%s10 + $0x18] sm:$0xff] %v1613
  %1630 = vst [vmem:[%s10 + $0x20] sm:$0xff] %v1614
  %1631 = vst [vmem:[%s10 + $0x28] sm:$0xff] %v1615
  %1632 = vst [vmem:[%s10 + $0x30] sm:$0xff] %v1616
  %1633 = vst [vmem:[%s10 + $0x38] sm:$0xff] %v1617
  %1634 = vst [vmem:[%s10 + $0x40] sm:$0xff] %v1618
  %1635 = vst [vmem:[%s10 + $0x48] sm:$0xff] %v1619
  %1636 = vst [vmem:[%s10 + $0x50] sm:$0xff] %v1620
  %1637 = vst [vmem:[%s10 + $0x58] sm:$0xff] %v1621
  %1638 = vst [vmem:[%s10 + $0x60] sm:$0xff] %v1622
  %1639 = vst [vmem:[%s10 + $0x68] sm:$0xff] %v1623
  %1640 = vst [vmem:[%s10 + $0x70] sm:$0xff] %v1624
  %1641 = vst [vmem:[%s10 + $0x78] sm:$0xff] %v1625
  // Predicated region
  $region42: #{down_forward.1} parent=0 // pred_check
    _
  $region43: #{down_forward.1} parent=0 // pred_check_branch
    %1643 = sbr.rel (0) target = $region45
  $region44: #{down_forward.1} parent=0 // pred_region
    _
  $region45: #{down_forward.1} parent=0 // pred_fallthru
    _
  // Predicated region
  $region46: #{down_forward.1} parent=0 // pred_check
    _
  $region47: #{down_forward.1} parent=0 // pred_check_branch
    %1645 = sbr.rel (0) target = $region49
  $region48: #{down_forward.1} parent=0 // pred_region
    _
  $region49: #{down_forward.1} parent=0 // pred_fallthru
    _

</llo_original>
